<compile_context>
chip_gen: v5e
topology: v5e:2x2
jax: 0.10.0
libtpu: 0.0.40
codegen_flags: <defaults>
</compile_context>

<pallas_src>
import functools

import jax
import jax.numpy as jnp
import numpy as np
from jax.experimental import pallas as pl
from jax.experimental.pallas import tpu as pltpu

# Set True on v6e/v7x production runs: bf16 GEMM operands, f32 accumulate.
# Kept False here so the f32 reference check passes at tight tolerance.
USE_BF16_GEMM = False
_VMEM_LIMIT = 32 * 1024 * 1024  # safe on v5e/v6e/v7x (v7x physical = 64 MiB/TC)


def _round_up(x, m):
    return ((x + m - 1) // m) * m


# --------------------------- tiled matmul kernel ---------------------------- #

def _matmul_bias_kernel(x_ref, w_ref, b_ref, o_ref, *, activation):
    y = jnp.dot(x_ref[...], w_ref[...], preferred_element_type=jnp.float32)
    y = y + b_ref[...]
    if activation == "relu":
        y = jnp.maximum(y, 0.0)
    o_ref[...] = y.astype(o_ref.dtype)


def pallas_linear(x, w, b, activation=None, tile_m=512):
    """act(x @ w + b); gridded over rows, lane-dense (128-padded) output cols."""
    M, K = x.shape
    Kw, N = w.shape
    assert K == Kw
    # Lane-dense output: pad N to a multiple of 128 with zero cols; slice after.
    Np = _round_up(N, 128)
    if Np != N:
        w = jnp.pad(w, ((0, 0), (0, Np - N)))
        b = jnp.pad(b, (0, Np - N))
    b2 = b.reshape(1, Np).astype(jnp.float32)
    # Row tiling: single full block when small, 512-row tiles otherwise.
    tm = tile_m if M >= tile_m else _round_up(max(M, 8), 8)
    Mp = _round_up(M, tm)
    if Mp != M:
        x = jnp.pad(x, ((0, Mp - M), (0, 0)))
    gdtype = jnp.bfloat16 if USE_BF16_GEMM else jnp.float32

    out = pl.pallas_call(
        functools.partial(_matmul_bias_kernel, activation=activation),
        out_shape=jax.ShapeDtypeStruct((Mp, Np), jnp.float32),
        grid=(Mp // tm,),
        in_specs=[
            pl.BlockSpec((tm, K), lambda i: (i, 0)),
            pl.BlockSpec((K, Np), lambda i: (0, 0)),
            pl.BlockSpec((1, Np), lambda i: (0, 0)),
        ],
        out_specs=pl.BlockSpec((tm, Np), lambda i: (i, 0)),
        compiler_params=pltpu.CompilerParams(
            dimension_semantics=("parallel",),
            vmem_limit_bytes=_VMEM_LIMIT),
        cost_estimate=pl.CostEstimate(
            flops=2 * Mp * K * Np,
            transcendentals=0,
            bytes_accessed=4 * (Mp * K + K * Np + Mp * Np)),
    )(x.astype(gdtype), w.astype(gdtype), b2)
    return out[:M, :N]


# ------------------------------ conv via im2col ----------------------------- #
# TODO(synk): patches are still materialized in HBM by XLA glue; a fully fused
# Pallas conv (index_map/Element-style patch gather) would remove that traffic.

def im2col_nhwc(x, k, stride):
    """x: (B,H,W,C) -> (B*OH*OW, k*k*C), columns in (kh, kw, c) order, no transposes."""
    B, H, W, C = x.shape
    OH = (H - k) // stride + 1
    OW = (W - k) // stride + 1
    rows = []
    for kh in range(k):
        cols = []
        for kw in range(k):
            cols.append(x[:, kh:kh + stride * OH:stride,
                          kw:kw + stride * OW:stride, :])   # (B, OH, OW, C)
        rows.append(jnp.stack(cols, axis=3))                 # (B, OH, OW, Kw, C)
    patches = jnp.stack(rows, axis=3)                        # (B, OH, OW, Kh, Kw, C)
    return patches.reshape(B * OH * OW, k * k * C), (B, OH, OW)


def conv2d_relu_nhwc(x, w, b, stride):
    """PyTorch-semantics Conv2d (OIHW weight, VALID) + bias + ReLU; NHWC in/out."""
    cout, cin, k, _ = w.shape
    patches, (B, OH, OW) = im2col_nhwc(x, k, stride)
    w_mat = jnp.transpose(w, (2, 3, 1, 0)).reshape(k * k * cin, cout)  # (kh,kw,c) rows
    y = pallas_linear(patches, w_mat, b, activation="relu")
    return y.reshape(B, OH, OW, cout)


# ---------------------- fused embed + q/v + distributional head ------------- #

def _head_constants(N, A, NAp):
    """D folds cumsum-over-N and mean-centering; E tiles the value head over N.

    Both are zero-padded on the output axis to NAp (multiple of 128) so the
    fused-head output block is lane-dense."""
    m = np.arange(N)
    tri = (m[:, None] <= m[None, :]).astype(np.float64)          # [m <= n]
    coef = tri - (N - m[:, None]).astype(np.float64) / N         # cumsum - mean
    D = np.kron(coef, np.eye(A)).astype(np.float32)              # (N*A, N*A)
    E = np.tile(np.eye(A), (1, N)).astype(np.float32)            # (A, N*A)
    NA = N * A
    D = np.pad(D, ((0, 0), (0, NAp - NA)))                       # (N*A, NAp)
    E = np.pad(E, ((0, 0), (0, NAp - NA)))                       # (A,   NAp)
    return jnp.asarray(D), jnp.asarray(E)


def _fused_head_kernel(x_ref, w1_ref, b1_ref, wq_ref, bq_ref, wv_ref, bv_ref,
                       d_ref, e_ref, o_ref):
    # embed = relu(x @ W_embed + b)
    embed = jnp.dot(x_ref[...], w1_ref[...], preferred_element_type=jnp.float32)
    embed = jnp.maximum(embed + b1_ref[...], 0.0).astype(wq_ref.dtype)
    # quantile logits and value head reuse the resident embed tile
    q = jnp.dot(embed, wq_ref[...], preferred_element_type=jnp.float32) + bq_ref[...]
    v = jnp.dot(embed, wv_ref[...], preferred_element_type=jnp.float32) + bv_ref[...]
    # sigma = elu(q) + 1  (exp only on the non-positive branch -> no inf in flight)
    sigma = jnp.where(q > 0.0, q, jnp.exp(jnp.minimum(q, 0.0)) - 1.0) + 1.0
    # out = value + cumsum_N(sigma) - mean_N(cumsum)   via constant matrices D, E
    core = jnp.dot(sigma, d_ref[...], preferred_element_type=jnp.float32)
    vt = jnp.dot(v, e_ref[...], preferred_element_type=jnp.float32)
    o_ref[...] = (core + vt).astype(o_ref.dtype)


def pallas_fused_head(state_embeddings, params, N, A):
    B, EMB = state_embeddings.shape
    NA = N * A
    NAp = _round_up(NA, 128)                 # lane-dense output width
    w1 = params["embed_w"]
    H1 = w1.shape[1]
    b1 = params["embed_b"].reshape(1, H1).astype(jnp.float32)
    wq, bq = params["q_w"], params["q_b"].reshape(1, NA).astype(jnp.float32)
    wv, bv = params["v_w"], params["v_b"].reshape(1, A).astype(jnp.float32)
    D, E = _head_constants(N, A, NAp)

    tile_b = _round_up(B, 8) if B <= 256 else 256
    Bp = _round_up(B, tile_b)
    x = state_embeddings
    if Bp != B:
        x = jnp.pad(x, ((0, Bp - B), (0, 0)))
    gdtype = jnp.bfloat16 if USE_BF16_GEMM else jnp.float32

    out = pl.pallas_call(
        _fused_head_kernel,
        out_shape=jax.ShapeDtypeStruct((Bp, NAp), jnp.float32),
        grid=(Bp // tile_b,),
        in_specs=[
            pl.BlockSpec((tile_b, EMB), lambda i: (i, 0)),
            pl.BlockSpec((EMB, H1), lambda i: (0, 0)),
            pl.BlockSpec((1, H1), lambda i: (0, 0)),
            pl.BlockSpec((H1, NA), lambda i: (0, 0)),
            pl.BlockSpec((1, NA), lambda i: (0, 0)),
            pl.BlockSpec((H1, A), lambda i: (0, 0)),
            pl.BlockSpec((1, A), lambda i: (0, 0)),
            pl.BlockSpec((NA, NAp), lambda i: (0, 0)),
            pl.BlockSpec((A, NAp), lambda i: (0, 0)),
        ],
        out_specs=pl.BlockSpec((tile_b, NAp), lambda i: (i, 0)),
        compiler_params=pltpu.CompilerParams(
            dimension_semantics=("parallel",),
            vmem_limit_bytes=_VMEM_LIMIT),
        cost_estimate=pl.CostEstimate(
            flops=2 * Bp * (EMB * H1 + H1 * (NA + A) + NA * NAp + A * NAp),
            transcendentals=Bp * NA,
            bytes_accessed=4 * (Bp * EMB + EMB * H1 + H1 * (NA + A)
                                + NA * NAp + A * NAp + Bp * NAp)),
    )(x.astype(gdtype), w1.astype(gdtype), b1,
      wq.astype(gdtype), bq, wv.astype(gdtype), bv, D, E)
    return out[:B, :NA].reshape(B, N, A)


# ------------------------------- DEnet forward ------------------------------ #

def init_params(key, num_channels, num_actions, N, embedding_dim):
    ks = jax.random.split(key, 12)
    w = lambda k, shape, s: jax.random.normal(k, shape, jnp.float32) * s
    return dict(
        conv1_w=w(ks[0], (32, num_channels, 8, 8), 0.05),
        conv1_b=w(ks[1], (32,), 0.05),
        conv2_w=w(ks[2], (64, 32, 4, 4), 0.05),
        conv2_b=w(ks[3], (64,), 0.05),
        conv3_w=w(ks[4], (64, 64, 3, 3), 0.05),
        conv3_b=w(ks[5], (64,), 0.05),
        embed_w=w(ks[6], (embedding_dim, 512), 0.03),
        embed_b=w(ks[7], (512,), 0.03),
        q_w=w(ks[8], (512, num_actions * N), 0.03),
        q_b=w(ks[9], (num_actions * N,), 0.03),
        v_w=w(ks[10], (512, num_actions), 0.03),
        v_b=w(ks[11], (num_actions,), 0.03),
    )


def denet_forward(params, states, N, num_actions):
    if states.ndim == 5:                       # states.squeeze(-1) in PyTorch
        states = states[..., 0]
    B = states.shape[0]
    x = jnp.transpose(states, (0, 2, 3, 1))    # NCHW -> NHWC once; stay NHWC
    h = conv2d_relu_nhwc(x, params["conv1_w"], params["conv1_b"], stride=4)
    h = conv2d_relu_nhwc(h, params["conv2_w"], params["conv2_b"], stride=2)
    h = conv2d_relu_nhwc(h, params["conv3_w"], params["conv3_b"], stride=1)
    # flatten in PyTorch NCHW order to match the embed weight layout (tiny
    # transpose on B*576 activations; cheaper than permuting the 576x512 weight
    # per call at small batch)
    state_embeddings = jnp.transpose(h, (0, 3, 1, 2)).reshape(B, -1)
    # embed_net + q_net + vnet + (elu+1 / cumsum / mean-center / +value) fused
    return pallas_fused_head(state_embeddings, params, N, num_actions)


# --------------------------- pure-JAX reference ----------------------------- #

def reference_forward(params, states, N, num_actions):
    B = states.shape[0]

    def conv(x, w, b, s):
        y = jax.lax.conv_general_dilated(
            x, w, (s, s), "VALID", dimension_numbers=("NCHW", "OIHW", "NCHW"))
        return jax.nn.relu(y + b[None, :, None, None])

    h = conv(states, params["conv1_w"], params["conv1_b"], 4)
    h = conv(h, params["conv2_w"], params["conv2_b"], 2)
    h = conv(h, params["conv3_w"], params["conv3_b"], 1)
    flat = h.reshape(B, -1)
    embed = jax.nn.relu(flat @ params["embed_w"] + params["embed_b"])
    quantiles = (embed @ params["q_w"] + params["q_b"]).reshape(B, N, num_actions)
    value = (embed @ params["v_w"] + params["v_b"]).reshape(B, 1, num_actions)
    sigma = jax.nn.elu(quantiles) + 1.0
    accu = jnp.cumsum(sigma, axis=1)
    return value + accu - accu.mean(axis=1, keepdims=True)


# ----------------------------------- main ----------------------------------- #

if __name__ == "__main__":
    # 52x52 frames -> conv stack output (64, 3, 3) -> embedding_dim = 576.
    num_channels, num_actions, N = 4, 6, 8
    B, H, W = 2, 52, 52
    embedding_dim = 64 * 3 * 3

    key = jax.random.PRNGKey(0)
    pkey, xkey = jax.random.split(key)
    params = init_params(pkey, num_channels, num_actions, N, embedding_dim)
    states = jax.random.uniform(xkey, (B, num_channels, H, W), jnp.float32)

    fwd = jax.jit(functools.partial(denet_forward, N=N, num_actions=num_actions))
    out = jax.block_until_ready(fwd(params, states))
    assert out.shape == (B, N, num_actions)

    ref = reference_forward(params, states, N, num_actions)
    tol = 3e-2 if USE_BF16_GEMM else 1e-3
    np.testing.assert_allclose(np.asarray(out), np.asarray(ref), rtol=tol, atol=tol)

    # TODO(synk): NoisyLinear / dueling_net / star branches are unused under the
    # module defaults (noisy_net=False, dueling_net=False, star=False) and are
    # not implemented.
    print("KERNEL_OK")
</pallas_src>

<mosaic_0001>
module attributes {stable_mosaic.version = 11 : i64} {
  func.func @_matmul_bias_kernel(%arg0: i32, %arg1: memref<288x256xf32, #tpu.memory_space<vmem>>, %arg2: memref<256x128xf32, #tpu.memory_space<vmem>>, %arg3: memref<1x128xf32, #tpu.memory_space<vmem>>, %arg4: memref<288x128xf32, #tpu.memory_space<vmem>>) attributes {dimension_semantics = [#tpu.dimension_semantics<parallel>], iteration_bounds = array<i64: 1>, scalar_prefetch = 0 : i64, scratch_operands = 0 : i64, tpu.core_type = #tpu.core_type<tc>, window_params = [{transform_indices = @transform_0, window_bounds = array<i64: 288, 256>}, {pipeline_mode = #tpu.pipeline_mode<synchronous>, transform_indices = @transform_1, window_bounds = array<i64: 256, 128>}, {pipeline_mode = #tpu.pipeline_mode<synchronous>, transform_indices = @transform_2, window_bounds = array<i64: 1, 128>}, {transform_indices = @transform_3, window_bounds = array<i64: 288, 128>}]} {
    %c0 = arith.constant 0 : index
    %c0_0 = arith.constant 0 : index
    %0 = vector.load %arg1[%c0, %c0_0] : memref<288x256xf32, #tpu.memory_space<vmem>>, vector<288x256xf32>
    %c0_1 = arith.constant 0 : index
    %c0_2 = arith.constant 0 : index
    %1 = vector.load %arg2[%c0_1, %c0_2] : memref<256x128xf32, #tpu.memory_space<vmem>>, vector<256x128xf32>
    %cst = arith.constant dense<0.000000e+00> : vector<288x128xf32>
    %2 = tpu.matmul %0, %1, %cst {dimension_numbers = #tpu.dot_dimension_numbers<[1], [0], [0], [1], [0, 0, 1, 1], [], []>} : vector<288x256xf32>, vector<256x128xf32>, vector<288x128xf32> -> vector<288x128xf32>
    %c0_3 = arith.constant 0 : index
    %c0_4 = arith.constant 0 : index
    %3 = vector.load %arg3[%c0_3, %c0_4] : memref<1x128xf32, #tpu.memory_space<vmem>>, vector<1x128xf32>
    %4 = vector.broadcast %3 : vector<1x128xf32> to vector<288x128xf32>
    %5 = arith.addf %2, %4 : vector<288x128xf32>
    %cst_5 = arith.constant 0.000000e+00 : f32
    %6 = vector.broadcast %cst_5 : f32 to vector<288x128xf32>
    %7 = arith.maximumf %5, %6 : vector<288x128xf32>
    %c0_6 = arith.constant 0 : index
    %c0_7 = arith.constant 0 : index
    %8 = vector.load %arg4[%c0_6, %c0_7] : memref<288x128xf32, #tpu.memory_space<vmem>>, vector<288x128xf32>
    tpu.vector_store %arg4[%c0_6, %c0_7], %7 {strides = array<i32>} : memref<288x128xf32, #tpu.memory_space<vmem>>, vector<288x128xf32>,
    return
  }
  func.func @transform_0(%arg0: i32) -> (i32, i32) {
    %c0_i32 = arith.constant 0 : i32
    %c0_i32_0 = arith.constant 0 : i32
    return %arg0, %c0_i32 : i32, i32
  }
  func.func @transform_1(%arg0: i32) -> (i32, i32) {
    %c0_i32 = arith.constant 0 : i32
    %c0_i32_0 = arith.constant 0 : i32
    %c0_i32_1 = arith.constant 0 : i32
    return %c0_i32, %c0_i32_0 : i32, i32
  }
  func.func @transform_2(%arg0: i32) -> (i32, i32) {
    %c0_i32 = arith.constant 0 : i32
    %c0_i32_0 = arith.constant 0 : i32
    %c0_i32_1 = arith.constant 0 : i32
    return %c0_i32, %c0_i32_0 : i32, i32
  }
  func.func @transform_3(%arg0: i32) -> (i32, i32) {
    %c0_i32 = arith.constant 0 : i32
    %c0_i32_0 = arith.constant 0 : i32
    return %arg0, %c0_i32 : i32, i32
  }
}

module attributes {stable_mosaic.version = 11 : i64} {
  func.func @_matmul_bias_kernel(%arg0: i32, %arg1: memref<56x512xf32, #tpu.memory_space<vmem>>, %arg2: memref<512x128xf32, #tpu.memory_space<vmem>>, %arg3: memref<1x128xf32, #tpu.memory_space<vmem>>, %arg4: memref<56x128xf32, #tpu.memory_space<vmem>>) attributes {dimension_semantics = [#tpu.dimension_semantics<parallel>], iteration_bounds = array<i64: 1>, scalar_prefetch = 0 : i64, scratch_operands = 0 : i64, tpu.core_type = #tpu.core_type<tc>, window_params = [{transform_indices = @transform_0, window_bounds = array<i64: 56, 512>}, {pipeline_mode = #tpu.pipeline_mode<synchronous>, transform_indices = @transform_1, window_bounds = array<i64: 512, 128>}, {pipeline_mode = #tpu.pipeline_mode<synchronous>, transform_indices = @transform_2, window_bounds = array<i64: 1, 128>}, {transform_indices = @transform_3, window_bounds = array<i64: 56, 128>}]} {
    %c0 = arith.constant 0 : index
    %c0_0 = arith.constant 0 : index
    %0 = vector.load %arg1[%c0, %c0_0] : memref<56x512xf32, #tpu.memory_space<vmem>>, vector<56x512xf32>
    %c0_1 = arith.constant 0 : index
    %c0_2 = arith.constant 0 : index
    %1 = vector.load %arg2[%c0_1, %c0_2] : memref<512x128xf32, #tpu.memory_space<vmem>>, vector<512x128xf32>
    %cst = arith.constant dense<0.000000e+00> : vector<56x128xf32>
    %2 = tpu.matmul %0, %1, %cst {dimension_numbers = #tpu.dot_dimension_numbers<[1], [0], [0], [1], [0, 0, 1, 1], [], []>} : vector<56x512xf32>, vector<512x128xf32>, vector<56x128xf32> -> vector<56x128xf32>
    %c0_3 = arith.constant 0 : index
    %c0_4 = arith.constant 0 : index
    %3 = vector.load %arg3[%c0_3, %c0_4] : memref<1x128xf32, #tpu.memory_space<vmem>>, vector<1x128xf32>
    %4 = vector.broadcast %3 : vector<1x128xf32> to vector<56x128xf32>
    %5 = arith.addf %2, %4 : vector<56x128xf32>
    %cst_5 = arith.constant 0.000000e+00 : f32
    %6 = vector.broadcast %cst_5 : f32 to vector<56x128xf32>
    %7 = arith.maximumf %5, %6 : vector<56x128xf32>
    %c0_6 = arith.constant 0 : index
    %c0_7 = arith.constant 0 : index
    %8 = vector.load %arg4[%c0_6, %c0_7] : memref<56x128xf32, #tpu.memory_space<vmem>>, vector<56x128xf32>
    tpu.vector_store %arg4[%c0_6, %c0_7], %7 {strides = array<i32>} : memref<56x128xf32, #tpu.memory_space<vmem>>, vector<56x128xf32>,
    return
  }
  func.func @transform_0(%arg0: i32) -> (i32, i32) {
    %c0_i32 = arith.constant 0 : i32
    %c0_i32_0 = arith.constant 0 : i32
    return %arg0, %c0_i32 : i32, i32
  }
  func.func @transform_1(%arg0: i32) -> (i32, i32) {
    %c0_i32 = arith.constant 0 : i32
    %c0_i32_0 = arith.constant 0 : i32
    %c0_i32_1 = arith.constant 0 : i32
    return %c0_i32, %c0_i32_0 : i32, i32
  }
  func.func @transform_2(%arg0: i32) -> (i32, i32) {
    %c0_i32 = arith.constant 0 : i32
    %c0_i32_0 = arith.constant 0 : i32
    %c0_i32_1 = arith.constant 0 : i32
    return %c0_i32, %c0_i32_0 : i32, i32
  }
  func.func @transform_3(%arg0: i32) -> (i32, i32) {
    %c0_i32 = arith.constant 0 : i32
    %c0_i32_0 = arith.constant 0 : i32
    return %arg0, %c0_i32 : i32, i32
  }
}

module attributes {stable_mosaic.version = 11 : i64} {
  func.func @_matmul_bias_kernel(%arg0: i32, %arg1: memref<24x576xf32, #tpu.memory_space<vmem>>, %arg2: memref<576x128xf32, #tpu.memory_space<vmem>>, %arg3: memref<1x128xf32, #tpu.memory_space<vmem>>, %arg4: memref<24x128xf32, #tpu.memory_space<vmem>>) attributes {dimension_semantics = [#tpu.dimension_semantics<parallel>], iteration_bounds = array<i64: 1>, scalar_prefetch = 0 : i64, scratch_operands = 0 : i64, tpu.core_type = #tpu.core_type<tc>, window_params = [{transform_indices = @transform_0, window_bounds = array<i64: 24, 576>}, {pipeline_mode = #tpu.pipeline_mode<synchronous>, transform_indices = @transform_1, window_bounds = array<i64: 576, 128>}, {pipeline_mode = #tpu.pipeline_mode<synchronous>, transform_indices = @transform_2, window_bounds = array<i64: 1, 128>}, {transform_indices = @transform_3, window_bounds = array<i64: 24, 128>}]} {
    %c0 = arith.constant 0 : index
    %c0_0 = arith.constant 0 : index
    %0 = vector.load %arg1[%c0, %c0_0] : memref<24x576xf32, #tpu.memory_space<vmem>>, vector<24x576xf32>
    %c0_1 = arith.constant 0 : index
    %c0_2 = arith.constant 0 : index
    %1 = vector.load %arg2[%c0_1, %c0_2] : memref<576x128xf32, #tpu.memory_space<vmem>>, vector<576x128xf32>
    %cst = arith.constant dense<0.000000e+00> : vector<24x128xf32>
    %2 = tpu.matmul %0, %1, %cst {dimension_numbers = #tpu.dot_dimension_numbers<[1], [0], [0], [1], [0, 0, 1, 1], [], []>} : vector<24x576xf32>, vector<576x128xf32>, vector<24x128xf32> -> vector<24x128xf32>
    %c0_3 = arith.constant 0 : index
    %c0_4 = arith.constant 0 : index
    %3 = vector.load %arg3[%c0_3, %c0_4] : memref<1x128xf32, #tpu.memory_space<vmem>>, vector<1x128xf32>
    %4 = vector.broadcast %3 : vector<1x128xf32> to vector<24x128xf32>
    %5 = arith.addf %2, %4 : vector<24x128xf32>
    %cst_5 = arith.constant 0.000000e+00 : f32
    %6 = vector.broadcast %cst_5 : f32 to vector<24x128xf32>
    %7 = arith.maximumf %5, %6 : vector<24x128xf32>
    %c0_6 = arith.constant 0 : index
    %c0_7 = arith.constant 0 : index
    %8 = vector.load %arg4[%c0_6, %c0_7] : memref<24x128xf32, #tpu.memory_space<vmem>>, vector<24x128xf32>
    tpu.vector_store %arg4[%c0_6, %c0_7], %7 {strides = array<i32>} : memref<24x128xf32, #tpu.memory_space<vmem>>, vector<24x128xf32>,
    return
  }
  func.func @transform_0(%arg0: i32) -> (i32, i32) {
    %c0_i32 = arith.constant 0 : i32
    %c0_i32_0 = arith.constant 0 : i32
    return %arg0, %c0_i32 : i32, i32
  }
  func.func @transform_1(%arg0: i32) -> (i32, i32) {
    %c0_i32 = arith.constant 0 : i32
    %c0_i32_0 = arith.constant 0 : i32
    %c0_i32_1 = arith.constant 0 : i32
    return %c0_i32, %c0_i32_0 : i32, i32
  }
  func.func @transform_2(%arg0: i32) -> (i32, i32) {
    %c0_i32 = arith.constant 0 : i32
    %c0_i32_0 = arith.constant 0 : i32
    %c0_i32_1 = arith.constant 0 : i32
    return %c0_i32, %c0_i32_0 : i32, i32
  }
  func.func @transform_3(%arg0: i32) -> (i32, i32) {
    %c0_i32 = arith.constant 0 : i32
    %c0_i32_0 = arith.constant 0 : i32
    return %arg0, %c0_i32 : i32, i32
  }
}

module attributes {stable_mosaic.version = 11 : i64} {
  func.func @_fused_head_kernel(%arg0: i32, %arg1: memref<8x576xf32, #tpu.memory_space<vmem>>, %arg2: memref<576x512xf32, #tpu.memory_space<vmem>>, %arg3: memref<1x512xf32, #tpu.memory_space<vmem>>, %arg4: memref<512x48xf32, #tpu.memory_space<vmem>>, %arg5: memref<1x48xf32, #tpu.memory_space<vmem>>, %arg6: memref<512x6xf32, #tpu.memory_space<vmem>>, %arg7: memref<1x6xf32, #tpu.memory_space<vmem>>, %arg8: memref<48x128xf32, #tpu.memory_space<vmem>>, %arg9: memref<6x128xf32, #tpu.memory_space<vmem>>, %arg10: memref<8x128xf32, #tpu.memory_space<vmem>>) attributes {dimension_semantics = [#tpu.dimension_semantics<parallel>], iteration_bounds = array<i64: 1>, scalar_prefetch = 0 : i64, scratch_operands = 0 : i64, tpu.core_type = #tpu.core_type<tc>, window_params = [{transform_indices = @transform_0, window_bounds = array<i64: 8, 576>}, {pipeline_mode = #tpu.pipeline_mode<synchronous>, transform_indices = @transform_1, window_bounds = array<i64: 576, 512>}, {pipeline_mode = #tpu.pipeline_mode<synchronous>, transform_indices = @transform_2, window_bounds = array<i64: 1, 512>}, {pipeline_mode = #tpu.pipeline_mode<synchronous>, transform_indices = @transform_3, window_bounds = array<i64: 512, 48>}, {pipeline_mode = #tpu.pipeline_mode<synchronous>, transform_indices = @transform_4, window_bounds = array<i64: 1, 48>}, {pipeline_mode = #tpu.pipeline_mode<synchronous>, transform_indices = @transform_5, window_bounds = array<i64: 512, 6>}, {pipeline_mode = #tpu.pipeline_mode<synchronous>, transform_indices = @transform_6, window_bounds = array<i64: 1, 6>}, {pipeline_mode = #tpu.pipeline_mode<synchronous>, transform_indices = @transform_7, window_bounds = array<i64: 48, 128>}, {pipeline_mode = #tpu.pipeline_mode<synchronous>, transform_indices = @transform_8, window_bounds = array<i64: 6, 128>}, {transform_indices = @transform_9, window_bounds = array<i64: 8, 128>}]} {
    %c0 = arith.constant 0 : index
    %c0_0 = arith.constant 0 : index
    %0 = vector.load %arg1[%c0, %c0_0] : memref<8x576xf32, #tpu.memory_space<vmem>>, vector<8x576xf32>
    %c0_1 = arith.constant 0 : index
    %c0_2 = arith.constant 0 : index
    %1 = vector.load %arg2[%c0_1, %c0_2] : memref<576x512xf32, #tpu.memory_space<vmem>>, vector<576x512xf32>
    %cst = arith.constant dense<0.000000e+00> : vector<8x512xf32>
    %2 = tpu.matmul %0, %1, %cst {dimension_numbers = #tpu.dot_dimension_numbers<[1], [0], [0], [1], [0, 0, 1, 1], [], []>} : vector<8x576xf32>, vector<576x512xf32>, vector<8x512xf32> -> vector<8x512xf32>
    %c0_3 = arith.constant 0 : index
    %c0_4 = arith.constant 0 : index
    %3 = vector.load %arg3[%c0_3, %c0_4] : memref<1x512xf32, #tpu.memory_space<vmem>>, vector<1x512xf32>
    %4 = vector.broadcast %3 : vector<1x512xf32> to vector<8x512xf32>
    %5 = arith.addf %2, %4 : vector<8x512xf32>
    %cst_5 = arith.constant 0.000000e+00 : f32
    %6 = vector.broadcast %cst_5 : f32 to vector<8x512xf32>
    %7 = arith.maximumf %5, %6 : vector<8x512xf32>
    %c0_6 = arith.constant 0 : index
    %c0_7 = arith.constant 0 : index
    %8 = vector.load %arg4[%c0_6, %c0_7] : memref<512x48xf32, #tpu.memory_space<vmem>>, vector<512x48xf32>
    %cst_8 = arith.constant dense<0.000000e+00> : vector<8x48xf32>
    %9 = tpu.matmul %7, %8, %cst_8 {dimension_numbers = #tpu.dot_dimension_numbers<[1], [0], [0], [1], [0, 0, 1, 1], [], []>} : vector<8x512xf32>, vector<512x48xf32>, vector<8x48xf32> -> vector<8x48xf32>
    %c0_9 = arith.constant 0 : index
    %c0_10 = arith.constant 0 : index
    %10 = vector.load %arg5[%c0_9, %c0_10] : memref<1x48xf32, #tpu.memory_space<vmem>>, vector<1x48xf32>
    %11 = vector.broadcast %10 : vector<1x48xf32> to vector<8x48xf32>
    %12 = arith.addf %9, %11 : vector<8x48xf32>
    %c0_11 = arith.constant 0 : index
    %c0_12 = arith.constant 0 : index
    %13 = vector.load %arg6[%c0_11, %c0_12] : memref<512x6xf32, #tpu.memory_space<vmem>>, vector<512x6xf32>
    %cst_13 = arith.constant dense<0.000000e+00> : vector<8x6xf32>
    %14 = tpu.matmul %7, %13, %cst_13 {dimension_numbers = #tpu.dot_dimension_numbers<[1], [0], [0], [1], [0, 0, 1, 1], [], []>} : vector<8x512xf32>, vector<512x6xf32>, vector<8x6xf32> -> vector<8x6xf32>
    %c0_14 = arith.constant 0 : index
    %c0_15 = arith.constant 0 : index
    %15 = vector.load %arg7[%c0_14, %c0_15] : memref<1x6xf32, #tpu.memory_space<vmem>>, vector<1x6xf32>
    %16 = vector.broadcast %15 : vector<1x6xf32> to vector<8x6xf32>
    %17 = arith.addf %14, %16 : vector<8x6xf32>
    %cst_16 = arith.constant 0.000000e+00 : f32
    %18 = vector.broadcast %cst_16 : f32 to vector<8x48xf32>
    %19 = arith.cmpf ogt, %12, %18 : vector<8x48xf32>
    %cst_17 = arith.constant 0.000000e+00 : f32
    %20 = vector.broadcast %cst_17 : f32 to vector<8x48xf32>
    %21 = arith.minimumf %12, %20 : vector<8x48xf32>
    %22 = math.exp %21 : vector<8x48xf32>
    %cst_18 = arith.constant 1.000000e+00 : f32
    %23 = vector.broadcast %cst_18 : f32 to vector<8x48xf32>
    %24 = arith.subf %22, %23 : vector<8x48xf32>
    %25 = arith.select %19, %12, %24 : vector<8x48xi1>, vector<8x48xf32>
    %cst_19 = arith.constant 1.000000e+00 : f32
    %26 = vector.broadcast %cst_19 : f32 to vector<8x48xf32>
    %27 = arith.addf %25, %26 : vector<8x48xf32>
    %c0_20 = arith.constant 0 : index
    %c0_21 = arith.constant 0 : index
    %28 = vector.load %arg8[%c0_20, %c0_21] : memref<48x128xf32, #tpu.memory_space<vmem>>, vector<48x128xf32>
    %cst_22 = arith.constant dense<0.000000e+00> : vector<8x128xf32>
    %29 = tpu.matmul %27, %28, %cst_22 {dimension_numbers = #tpu.dot_dimension_numbers<[1], [0], [0], [1], [0, 0, 1, 1], [], []>} : vector<8x48xf32>, vector<48x128xf32>, vector<8x128xf32> -> vector<8x128xf32>
    %c0_23 = arith.constant 0 : index
    %c0_24 = arith.constant 0 : index
    %30 = vector.load %arg9[%c0_23, %c0_24] : memref<6x128xf32, #tpu.memory_space<vmem>>, vector<6x128xf32>
    %cst_25 = arith.constant dense<0.000000e+00> : vector<8x128xf32>
    %31 = tpu.matmul %17, %30, %cst_25 {dimension_numbers = #tpu.dot_dimension_numbers<[1], [0], [0], [1], [0, 0, 1, 1], [], []>} : vector<8x6xf32>, vector<6x128xf32>, vector<8x128xf32> -> vector<8x128xf32>
    %32 = arith.addf %29, %31 : vector<8x128xf32>
    %c0_26 = arith.constant 0 : index
    %c0_27 = arith.constant 0 : index
    %33 = vector.load %arg10[%c0_26, %c0_27] : memref<8x128xf32, #tpu.memory_space<vmem>>, vector<8x128xf32>
    tpu.vector_store %arg10[%c0_26, %c0_27], %32 {strides = array<i32>} : memref<8x128xf32, #tpu.memory_space<vmem>>, vector<8x128xf32>,
    return
  }
  func.func @transform_0(%arg0: i32) -> (i32, i32) {
    %c0_i32 = arith.constant 0 : i32
    %c0_i32_0 = arith.constant 0 : i32
    return %arg0, %c0_i32 : i32, i32
  }
  func.func @transform_1(%arg0: i32) -> (i32, i32) {
    %c0_i32 = arith.constant 0 : i32
    %c0_i32_0 = arith.constant 0 : i32
    %c0_i32_1 = arith.constant 0 : i32
    return %c0_i32, %c0_i32_0 : i32, i32
  }
  func.func @transform_2(%arg0: i32) -> (i32, i32) {
    %c0_i32 = arith.constant 0 : i32
    %c0_i32_0 = arith.constant 0 : i32
    %c0_i32_1 = arith.constant 0 : i32
    return %c0_i32, %c0_i32_0 : i32, i32
  }
  func.func @transform_3(%arg0: i32) -> (i32, i32) {
    %c0_i32 = arith.constant 0 : i32
    %c0_i32_0 = arith.constant 0 : i32
    %c0_i32_1 = arith.constant 0 : i32
    return %c0_i32, %c0_i32_0 : i32, i32
  }
  func.func @transform_4(%arg0: i32) -> (i32, i32) {
    %c0_i32 = arith.constant 0 : i32
    %c0_i32_0 = arith.constant 0 : i32
    %c0_i32_1 = arith.constant 0 : i32
    return %c0_i32, %c0_i32_0 : i32, i32
  }
  func.func @transform_5(%arg0: i32) -> (i32, i32) {
    %c0_i32 = arith.constant 0 : i32
    %c0_i32_0 = arith.constant 0 : i32
    %c0_i32_1 = arith.constant 0 : i32
    return %c0_i32, %c0_i32_0 : i32, i32
  }
  func.func @transform_6(%arg0: i32) -> (i32, i32) {
    %c0_i32 = arith.constant 0 : i32
    %c0_i32_0 = arith.constant 0 : i32
    %c0_i32_1 = arith.constant 0 : i32
    return %c0_i32, %c0_i32_0 : i32, i32
  }
  func.func @transform_7(%arg0: i32) -> (i32, i32) {
    %c0_i32 = arith.constant 0 : i32
    %c0_i32_0 = arith.constant 0 : i32
    %c0_i32_1 = arith.constant 0 : i32
    return %c0_i32, %c0_i32_0 : i32, i32
  }
  func.func @transform_8(%arg0: i32) -> (i32, i32) {
    %c0_i32 = arith.constant 0 : i32
    %c0_i32_0 = arith.constant 0 : i32
    %c0_i32_1 = arith.constant 0 : i32
    return %c0_i32, %c0_i32_0 : i32, i32
  }
  func.func @transform_9(%arg0: i32) -> (i32, i32) {
    %c0_i32 = arith.constant 0 : i32
    %c0_i32_0 = arith.constant 0 : i32
    return %arg0, %c0_i32 : i32, i32
  }
}

</mosaic_0001>

<llo_original>
// kernel: denet_forward.4
$region0: #{denet_forward.4}
  #allocation0 [shape = 'u32[]', space=smem, size = 0x4, offset = 0x4, fixed_abs, tag = 'smem constant byte address 0x4 - core index']
  #allocation1 [shape = 'u32[72,128]{1,0:T(1,128)}', space=vmem, size = 0x9000, scoped, tag = 'internal scratch']
  %s0 = inlined_call_operand.vmem [shape: f32[288,256], index: 0, kind: input, shape index: {}]
  %s1 = inlined_call_operand.vmem [shape: f32[256,128], index: 1, kind: input, shape index: {}]
  %s2 = inlined_call_operand.vmem [shape: f32[1,128], index: 2, kind: input, shape index: {}]
  %s3 = inlined_call_operand.vmem [shape: f32[288,128], index: 3, kind: output, shape index: {}]
  %s4 = sld [smem:[#allocation0]]
  $region22: #{denet_forward.4} parent=0
    _
  %s6 = ssub.s32 1, %s4
  %s7 = scalar_select 0, %s6, %s4
  // Predicated region
  $region2: #{denet_forward.4} parent=0 // pred_check
    _
  $region3: #{denet_forward.4} parent=0 // pred_check_branch
    %9 = sbr.rel (0) target = $region5
  $region4: #{denet_forward.4} parent=0 // pred_region
    _
  $region5: #{denet_forward.4} parent=0 // pred_fallthru
    _
  // Predicated region
  $region6: #{denet_forward.4} parent=0 // pred_check
    _
  $region7: #{denet_forward.4} parent=0 // pred_check_branch
    %11 = sbr.rel (0) target = $region9
  $region8: #{denet_forward.4} parent=0 // pred_region
    _
  $region9: #{denet_forward.4} parent=0 // pred_fallthru
    _
  // Predicated region
  $region10: #{denet_forward.4} parent=0 // pred_check
    _
  $region11: #{denet_forward.4} parent=0 // pred_check_branch
    %13 = sbr.rel (0) target = $region13
  $region12: #{denet_forward.4} parent=0 // pred_region
    _
  $region13: #{denet_forward.4} parent=0 // pred_fallthru
    _
  %v14 = vld [vmem:[%s0] sm:$0xff]
  %v15 = vld [vmem:[%s0 + $0x8] sm:$0xff]
  %v16 = vld [vmem:[%s0 + $0x10] sm:$0xff]
  %v17 = vld [vmem:[%s0 + $0x18] sm:$0xff]
  %v18 = vld [vmem:[%s0 + $0x20] sm:$0xff]
  %v19 = vld [vmem:[%s0 + $0x28] sm:$0xff]
  %v20 = vld [vmem:[%s0 + $0x30] sm:$0xff]
  %v21 = vld [vmem:[%s0 + $0x38] sm:$0xff]
  %v22 = vld [vmem:[%s0 + $0x40] sm:$0xff]
  %v23 = vld [vmem:[%s0 + $0x48] sm:$0xff]
  %v24 = vld [vmem:[%s0 + $0x50] sm:$0xff]
  %v25 = vld [vmem:[%s0 + $0x58] sm:$0xff]
  %v26 = vld [vmem:[%s0 + $0x60] sm:$0xff]
  %v27 = vld [vmem:[%s0 + $0x68] sm:$0xff]
  %v28 = vld [vmem:[%s0 + $0x70] sm:$0xff]
  %v29 = vld [vmem:[%s0 + $0x78] sm:$0xff]
  %v30 = vld [vmem:[%s0 + $0x80] sm:$0xff]
  %v31 = vld [vmem:[%s0 + $0x88] sm:$0xff]
  %v32 = vld [vmem:[%s0 + $0x90] sm:$0xff]
  %v33 = vld [vmem:[%s0 + $0x98] sm:$0xff]
  %v34 = vld [vmem:[%s0 + $0xa0] sm:$0xff]
  %v35 = vld [vmem:[%s0 + $0xa8] sm:$0xff]
  %v36 = vld [vmem:[%s0 + $0xb0] sm:$0xff]
  %v37 = vld [vmem:[%s0 + $0xb8] sm:$0xff]
  %v38 = vld [vmem:[%s0 + $0xc0] sm:$0xff]
  %v39 = vld [vmem:[%s0 + $0xc8] sm:$0xff]
  %v40 = vld [vmem:[%s0 + $0xd0] sm:$0xff]
  %v41 = vld [vmem:[%s0 + $0xd8] sm:$0xff]
  %v42 = vld [vmem:[%s0 + $0xe0] sm:$0xff]
  %v43 = vld [vmem:[%s0 + $0xe8] sm:$0xff]
  %v44 = vld [vmem:[%s0 + $0xf0] sm:$0xff]
  %v45 = vld [vmem:[%s0 + $0xf8] sm:$0xff]
  %v46 = vld [vmem:[%s0 + $0x100] sm:$0xff]
  %v47 = vld [vmem:[%s0 + $0x108] sm:$0xff]
  %v48 = vld [vmem:[%s0 + $0x110] sm:$0xff]
  %v49 = vld [vmem:[%s0 + $0x118] sm:$0xff]
  %v50 = vld [vmem:[%s0 + $0x120] sm:$0xff]
  %v51 = vld [vmem:[%s0 + $0x128] sm:$0xff]
  %v52 = vld [vmem:[%s0 + $0x130] sm:$0xff]
  %v53 = vld [vmem:[%s0 + $0x138] sm:$0xff]
  %v54 = vld [vmem:[%s0 + $0x140] sm:$0xff]
  %v55 = vld [vmem:[%s0 + $0x148] sm:$0xff]
  %v56 = vld [vmem:[%s0 + $0x150] sm:$0xff]
  %v57 = vld [vmem:[%s0 + $0x158] sm:$0xff]
  %v58 = vld [vmem:[%s0 + $0x160] sm:$0xff]
  %v59 = vld [vmem:[%s0 + $0x168] sm:$0xff]
  %v60 = vld [vmem:[%s0 + $0x170] sm:$0xff]
  %v61 = vld [vmem:[%s0 + $0x178] sm:$0xff]
  %v62 = vld [vmem:[%s0 + $0x180] sm:$0xff]
  %v63 = vld [vmem:[%s0 + $0x188] sm:$0xff]
  %v64 = vld [vmem:[%s0 + $0x190] sm:$0xff]
  %v65 = vld [vmem:[%s0 + $0x198] sm:$0xff]
  %v66 = vld [vmem:[%s0 + $0x1a0] sm:$0xff]
  %v67 = vld [vmem:[%s0 + $0x1a8] sm:$0xff]
  %v68 = vld [vmem:[%s0 + $0x1b0] sm:$0xff]
  %v69 = vld [vmem:[%s0 + $0x1b8] sm:$0xff]
  %v70 = vld [vmem:[%s0 + $0x1c0] sm:$0xff]
  %v71 = vld [vmem:[%s0 + $0x1c8] sm:$0xff]
  %v72 = vld [vmem:[%s0 + $0x1d0] sm:$0xff]
  %v73 = vld [vmem:[%s0 + $0x1d8] sm:$0xff]
  %v74 = vld [vmem:[%s0 + $0x1e0] sm:$0xff]
  %v75 = vld [vmem:[%s0 + $0x1e8] sm:$0xff]
  %v76 = vld [vmem:[%s0 + $0x1f0] sm:$0xff]
  %v77 = vld [vmem:[%s0 + $0x1f8] sm:$0xff]
  %v78 = vld [vmem:[%s0 + $0x200] sm:$0xff]
  %v79 = vld [vmem:[%s0 + $0x208] sm:$0xff]
  %v80 = vld [vmem:[%s0 + $0x210] sm:$0xff]
  %v81 = vld [vmem:[%s0 + $0x218] sm:$0xff]
  %v82 = vld [vmem:[%s0 + $0x220] sm:$0xff]
  %v83 = vld [vmem:[%s0 + $0x228] sm:$0xff]
  %v84 = vld [vmem:[%s0 + $0x230] sm:$0xff]
  %v85 = vld [vmem:[%s0 + $0x238] sm:$0xff]
  %v86 = vld [vmem:[%s1] sm:$0xff]
  %v87 = vld [vmem:[%s1 + $0x8] sm:$0xff]
  %v88 = vld [vmem:[%s1 + $0x10] sm:$0xff]
  %v89 = vld [vmem:[%s1 + $0x18] sm:$0xff]
  %v90 = vld [vmem:[%s1 + $0x20] sm:$0xff]
  %v91 = vld [vmem:[%s1 + $0x28] sm:$0xff]
  %v92 = vld [vmem:[%s1 + $0x30] sm:$0xff]
  %v93 = vld [vmem:[%s1 + $0x38] sm:$0xff]
  %v94 = vld [vmem:[%s1 + $0x40] sm:$0xff]
  %v95 = vld [vmem:[%s1 + $0x48] sm:$0xff]
  %v96 = vld [vmem:[%s1 + $0x50] sm:$0xff]
  %v97 = vld [vmem:[%s1 + $0x58] sm:$0xff]
  %v98 = vld [vmem:[%s1 + $0x60] sm:$0xff]
  %v99 = vld [vmem:[%s1 + $0x68] sm:$0xff]
  %v100 = vld [vmem:[%s1 + $0x70] sm:$0xff]
  %v101 = vld [vmem:[%s1 + $0x78] sm:$0xff]
  %v102 = vld [vmem:[%s1 + $0x80] sm:$0xff]
  %v103 = vld [vmem:[%s1 + $0x88] sm:$0xff]
  %v104 = vld [vmem:[%s1 + $0x90] sm:$0xff]
  %v105 = vld [vmem:[%s1 + $0x98] sm:$0xff]
  %v106 = vld [vmem:[%s1 + $0xa0] sm:$0xff]
  %v107 = vld [vmem:[%s1 + $0xa8] sm:$0xff]
  %v108 = vld [vmem:[%s1 + $0xb0] sm:$0xff]
  %v109 = vld [vmem:[%s1 + $0xb8] sm:$0xff]
  %v110 = vld [vmem:[%s1 + $0xc0] sm:$0xff]
  %v111 = vld [vmem:[%s1 + $0xc8] sm:$0xff]
  %v112 = vld [vmem:[%s1 + $0xd0] sm:$0xff]
  %v113 = vld [vmem:[%s1 + $0xd8] sm:$0xff]
  %v114 = vld [vmem:[%s1 + $0xe0] sm:$0xff]
  %v115 = vld [vmem:[%s1 + $0xe8] sm:$0xff]
  %v116 = vld [vmem:[%s1 + $0xf0] sm:$0xff]
  %v117 = vld [vmem:[%s1 + $0xf8] sm:$0xff]
  %v118 = vld [vmem:[%s2] sm:$0x1]
  %v120 = vperm.slane %v118, 0
  %122 = vmatpush.msra.mxu0 %v101
  %123 = vmatpush.msra.mxu0 %v100
  %124 = vmatpush.msra.mxu0 %v99
  %125 = vmatpush.msra.mxu0 %v98
  %126 = vmatpush.msra.mxu0 %v97
  %127 = vmatpush.msra.mxu0 %v96
  %128 = vmatpush.msra.mxu0 %v95
  %129 = vmatpush.msra.mxu0 %v94
  %130 = vmatpush.msra.mxu0 %v93
  %131 = vmatpush.msra.mxu0 %v92
  %132 = vmatpush.msra.mxu0 %v91
  %133 = vmatpush.msra.mxu0 %v90
  %134 = vmatpush.msra.mxu0 %v89
  %135 = vmatpush.msra.mxu0 %v88
  %136 = vmatpush.msra.mxu0 %v87
  %137 = vmatpush.msra.mxu0 %v86
  %138 = vmatmul.f32.gmra.mxu0 %v14
  %v139 = vpop.f32.mrf.mxu0
  %v140 = vadd.f32 %v120, %v139
  %141 = vmatmul.f32.gmra.mxu0 %v16
  %v142 = vpop.f32.mrf.mxu0
  %v143 = vadd.f32 %v120, %v142
  %144 = vmatmul.f32.gmra.mxu0 %v18
  %v145 = vpop.f32.mrf.mxu0
  %v146 = vadd.f32 %v120, %v145
  %147 = vmatmul.f32.gmra.mxu0 %v20
  %v148 = vpop.f32.mrf.mxu0
  %v149 = vadd.f32 %v120, %v148
  %150 = vmatmul.f32.gmra.mxu0 %v22
  %v151 = vpop.f32.mrf.mxu0
  %v152 = vadd.f32 %v120, %v151
  %153 = vmatmul.f32.gmra.mxu0 %v24
  %v154 = vpop.f32.mrf.mxu0
  %v155 = vadd.f32 %v120, %v154
  %156 = vmatmul.f32.gmra.mxu0 %v26
  %v157 = vpop.f32.mrf.mxu0
  %v158 = vadd.f32 %v120, %v157
  %159 = vmatmul.f32.gmra.mxu0 %v28
  %v160 = vpop.f32.mrf.mxu0
  %v161 = vadd.f32 %v120, %v160
  %162 = vmatmul.f32.gmra.mxu0 %v30
  %v163 = vpop.f32.mrf.mxu0
  %v164 = vadd.f32 %v120, %v163
  %165 = vmatmul.f32.gmra.mxu0 %v32
  %v166 = vpop.f32.mrf.mxu0
  %v167 = vadd.f32 %v120, %v166
  %168 = vmatmul.f32.gmra.mxu0 %v34
  %v169 = vpop.f32.mrf.mxu0
  %v170 = vadd.f32 %v120, %v169
  %171 = vmatmul.f32.gmra.mxu0 %v36
  %v172 = vpop.f32.mrf.mxu0
  %v173 = vadd.f32 %v120, %v172
  %174 = vmatmul.f32.gmra.mxu0 %v38
  %v175 = vpop.f32.mrf.mxu0
  %v176 = vadd.f32 %v120, %v175
  %177 = vmatmul.f32.gmra.mxu0 %v40
  %v178 = vpop.f32.mrf.mxu0
  %v179 = vadd.f32 %v120, %v178
  %180 = vmatmul.f32.gmra.mxu0 %v42
  %v181 = vpop.f32.mrf.mxu0
  %v182 = vadd.f32 %v120, %v181
  %183 = vmatmul.f32.gmra.mxu0 %v44
  %v184 = vpop.f32.mrf.mxu0
  %v185 = vadd.f32 %v120, %v184
  %186 = vmatmul.f32.gmra.mxu0 %v46
  %v187 = vpop.f32.mrf.mxu0
  %v188 = vadd.f32 %v120, %v187
  %189 = vmatmul.f32.gmra.mxu0 %v48
  %v190 = vpop.f32.mrf.mxu0
  %v191 = vadd.f32 %v120, %v190
  %192 = vmatmul.f32.gmra.mxu0 %v50
  %v193 = vpop.f32.mrf.mxu0
  %v194 = vadd.f32 %v120, %v193
  %195 = vmatmul.f32.gmra.mxu0 %v52
  %v196 = vpop.f32.mrf.mxu0
  %v197 = vadd.f32 %v120, %v196
  %198 = vmatmul.f32.gmra.mxu0 %v54
  %v199 = vpop.f32.mrf.mxu0
  %v200 = vadd.f32 %v120, %v199
  %201 = vmatmul.f32.gmra.mxu0 %v56
  %v202 = vpop.f32.mrf.mxu0
  %v203 = vadd.f32 %v120, %v202
  %204 = vmatmul.f32.gmra.mxu0 %v58
  %v205 = vpop.f32.mrf.mxu0
  %v206 = vadd.f32 %v120, %v205
  %207 = vmatmul.f32.gmra.mxu0 %v60
  %v208 = vpop.f32.mrf.mxu0
  %v209 = vadd.f32 %v120, %v208
  %210 = vmatmul.f32.gmra.mxu0 %v62
  %v211 = vpop.f32.mrf.mxu0
  %v212 = vadd.f32 %v120, %v211
  %213 = vmatmul.f32.gmra.mxu0 %v64
  %v214 = vpop.f32.mrf.mxu0
  %v215 = vadd.f32 %v120, %v214
  %216 = vmatmul.f32.gmra.mxu0 %v66
  %v217 = vpop.f32.mrf.mxu0
  %v218 = vadd.f32 %v120, %v217
  %219 = vmatmul.f32.gmra.mxu0 %v68
  %v220 = vpop.f32.mrf.mxu0
  %v221 = vadd.f32 %v120, %v220
  %222 = vmatmul.f32.gmra.mxu0 %v70
  %v223 = vpop.f32.mrf.mxu0
  %v224 = vadd.f32 %v120, %v223
  %225 = vmatmul.f32.gmra.mxu0 %v72
  %v226 = vpop.f32.mrf.mxu0
  %v227 = vadd.f32 %v120, %v226
  %228 = vmatmul.f32.gmra.mxu0 %v74
  %v229 = vpop.f32.mrf.mxu0
  %v230 = vadd.f32 %v120, %v229
  %231 = vmatmul.f32.gmra.mxu0 %v76
  %v232 = vpop.f32.mrf.mxu0
  %v233 = vadd.f32 %v120, %v232
  %234 = vmatmul.f32.gmra.mxu0 %v78
  %v235 = vpop.f32.mrf.mxu0
  %v236 = vadd.f32 %v120, %v235
  %237 = vmatmul.f32.gmra.mxu0 %v80
  %v238 = vpop.f32.mrf.mxu0
  %v239 = vadd.f32 %v120, %v238
  %240 = vmatmul.f32.gmra.mxu0 %v82
  %v241 = vpop.f32.mrf.mxu0
  %v242 = vadd.f32 %v120, %v241
  %243 = vmatmul.f32.gmra.mxu0 %v84
  %v244 = vpop.f32.mrf.mxu0
  %v245 = vadd.f32 %v120, %v244
  %246 = vdwg.mxu0
  %247 = vmatpush.msra.mxu0 %v117
  %248 = vmatpush.msra.mxu0 %v116
  %249 = vmatpush.msra.mxu0 %v115
  %250 = vmatpush.msra.mxu0 %v114
  %251 = vmatpush.msra.mxu0 %v113
  %252 = vmatpush.msra.mxu0 %v112
  %253 = vmatpush.msra.mxu0 %v111
  %254 = vmatpush.msra.mxu0 %v110
  %255 = vmatpush.msra.mxu0 %v109
  %256 = vmatpush.msra.mxu0 %v108
  %257 = vmatpush.msra.mxu0 %v107
  %258 = vmatpush.msra.mxu0 %v106
  %259 = vmatpush.msra.mxu0 %v105
  %260 = vmatpush.msra.mxu0 %v104
  %261 = vmatpush.msra.mxu0 %v103
  %262 = vmatpush.msra.mxu0 %v102
  %263 = vmatmul.f32.gmra.mxu0 %v15
  %v264 = vpop.f32.mrf.mxu0
  %v265 = vadd.f32 %v140, %v264
  %266 = vmatmul.f32.gmra.mxu0 %v17
  %v267 = vpop.f32.mrf.mxu0
  %v268 = vadd.f32 %v143, %v267
  %269 = vmatmul.f32.gmra.mxu0 %v19
  %v270 = vpop.f32.mrf.mxu0
  %v271 = vadd.f32 %v146, %v270
  %272 = vmatmul.f32.gmra.mxu0 %v21
  %v273 = vpop.f32.mrf.mxu0
  %v274 = vadd.f32 %v149, %v273
  %275 = vmatmul.f32.gmra.mxu0 %v23
  %v276 = vpop.f32.mrf.mxu0
  %v277 = vadd.f32 %v152, %v276
  %278 = vmatmul.f32.gmra.mxu0 %v25
  %v279 = vpop.f32.mrf.mxu0
  %v280 = vadd.f32 %v155, %v279
  %281 = vmatmul.f32.gmra.mxu0 %v27
  %v282 = vpop.f32.mrf.mxu0
  %v283 = vadd.f32 %v158, %v282
  %284 = vmatmul.f32.gmra.mxu0 %v29
  %v285 = vpop.f32.mrf.mxu0
  %v286 = vadd.f32 %v161, %v285
  %287 = vmatmul.f32.gmra.mxu0 %v31
  %v288 = vpop.f32.mrf.mxu0
  %v289 = vadd.f32 %v164, %v288
  %290 = vmatmul.f32.gmra.mxu0 %v33
  %v291 = vpop.f32.mrf.mxu0
  %v292 = vadd.f32 %v167, %v291
  %293 = vmatmul.f32.gmra.mxu0 %v35
  %v294 = vpop.f32.mrf.mxu0
  %v295 = vadd.f32 %v170, %v294
  %296 = vmatmul.f32.gmra.mxu0 %v37
  %v297 = vpop.f32.mrf.mxu0
  %v298 = vadd.f32 %v173, %v297
  %299 = vmatmul.f32.gmra.mxu0 %v39
  %v300 = vpop.f32.mrf.mxu0
  %v301 = vadd.f32 %v176, %v300
  %302 = vmatmul.f32.gmra.mxu0 %v41
  %v303 = vpop.f32.mrf.mxu0
  %v304 = vadd.f32 %v179, %v303
  %305 = vmatmul.f32.gmra.mxu0 %v43
  %v306 = vpop.f32.mrf.mxu0
  %v307 = vadd.f32 %v182, %v306
  %308 = vmatmul.f32.gmra.mxu0 %v45
  %v309 = vpop.f32.mrf.mxu0
  %v310 = vadd.f32 %v185, %v309
  %311 = vmatmul.f32.gmra.mxu0 %v47
  %v312 = vpop.f32.mrf.mxu0
  %v313 = vadd.f32 %v188, %v312
  %314 = vmatmul.f32.gmra.mxu0 %v49
  %v315 = vpop.f32.mrf.mxu0
  %v316 = vadd.f32 %v191, %v315
  %317 = vmatmul.f32.gmra.mxu0 %v51
  %v318 = vpop.f32.mrf.mxu0
  %v319 = vadd.f32 %v194, %v318
  %320 = vmatmul.f32.gmra.mxu0 %v53
  %v321 = vpop.f32.mrf.mxu0
  %v322 = vadd.f32 %v197, %v321
  %323 = vmatmul.f32.gmra.mxu0 %v55
  %v324 = vpop.f32.mrf.mxu0
  %v325 = vadd.f32 %v200, %v324
  %326 = vmatmul.f32.gmra.mxu0 %v57
  %v327 = vpop.f32.mrf.mxu0
  %v328 = vadd.f32 %v203, %v327
  %329 = vmatmul.f32.gmra.mxu0 %v59
  %v330 = vpop.f32.mrf.mxu0
  %v331 = vadd.f32 %v206, %v330
  %332 = vmatmul.f32.gmra.mxu0 %v61
  %v333 = vpop.f32.mrf.mxu0
  %v334 = vadd.f32 %v209, %v333
  %335 = vmatmul.f32.gmra.mxu0 %v63
  %v336 = vpop.f32.mrf.mxu0
  %v337 = vadd.f32 %v212, %v336
  %338 = vmatmul.f32.gmra.mxu0 %v65
  %v339 = vpop.f32.mrf.mxu0
  %v340 = vadd.f32 %v215, %v339
  %341 = vmatmul.f32.gmra.mxu0 %v67
  %v342 = vpop.f32.mrf.mxu0
  %v343 = vadd.f32 %v218, %v342
  %344 = vmatmul.f32.gmra.mxu0 %v69
  %v345 = vpop.f32.mrf.mxu0
  %v346 = vadd.f32 %v221, %v345
  %347 = vmatmul.f32.gmra.mxu0 %v71
  %v348 = vpop.f32.mrf.mxu0
  %v349 = vadd.f32 %v224, %v348
  %350 = vmatmul.f32.gmra.mxu0 %v73
  %v351 = vpop.f32.mrf.mxu0
  %v352 = vadd.f32 %v227, %v351
  %353 = vmatmul.f32.gmra.mxu0 %v75
  %v354 = vpop.f32.mrf.mxu0
  %v355 = vadd.f32 %v230, %v354
  %356 = vmatmul.f32.gmra.mxu0 %v77
  %v357 = vpop.f32.mrf.mxu0
  %v358 = vadd.f32 %v233, %v357
  %359 = vmatmul.f32.gmra.mxu0 %v79
  %v360 = vpop.f32.mrf.mxu0
  %v361 = vadd.f32 %v236, %v360
  %362 = vmatmul.f32.gmra.mxu0 %v81
  %v363 = vpop.f32.mrf.mxu0
  %v364 = vadd.f32 %v239, %v363
  %365 = vmatmul.f32.gmra.mxu0 %v83
  %v366 = vpop.f32.mrf.mxu0
  %v367 = vadd.f32 %v242, %v366
  %368 = vmatmul.f32.gmra.mxu0 %v85
  %v369 = vpop.f32.mrf.mxu0
  %v370 = vadd.f32 %v245, %v369
  %371 = vdwg.mxu0
  %v372 = vmax.f32 %v265, 0.0
  %v373 = vmax.f32 %v268, 0.0
  %v374 = vmax.f32 %v271, 0.0
  %v375 = vmax.f32 %v274, 0.0
  %v376 = vmax.f32 %v277, 0.0
  %v377 = vmax.f32 %v280, 0.0
  %v378 = vmax.f32 %v283, 0.0
  %v379 = vmax.f32 %v286, 0.0
  %v380 = vmax.f32 %v289, 0.0
  %v381 = vmax.f32 %v292, 0.0
  %v382 = vmax.f32 %v295, 0.0
  %v383 = vmax.f32 %v298, 0.0
  %v384 = vmax.f32 %v301, 0.0
  %v385 = vmax.f32 %v304, 0.0
  %v386 = vmax.f32 %v307, 0.0
  %v387 = vmax.f32 %v310, 0.0
  %v388 = vmax.f32 %v313, 0.0
  %v389 = vmax.f32 %v316, 0.0
  %v390 = vmax.f32 %v319, 0.0
  %v391 = vmax.f32 %v322, 0.0
  %v392 = vmax.f32 %v325, 0.0
  %v393 = vmax.f32 %v328, 0.0
  %v394 = vmax.f32 %v331, 0.0
  %v395 = vmax.f32 %v334, 0.0
  %v396 = vmax.f32 %v337, 0.0
  %v397 = vmax.f32 %v340, 0.0
  %v398 = vmax.f32 %v343, 0.0
  %v399 = vmax.f32 %v346, 0.0
  %v400 = vmax.f32 %v349, 0.0
  %v401 = vmax.f32 %v352, 0.0
  %v402 = vmax.f32 %v355, 0.0
  %v403 = vmax.f32 %v358, 0.0
  %v404 = vmax.f32 %v361, 0.0
  %v405 = vmax.f32 %v364, 0.0
  %v406 = vmax.f32 %v367, 0.0
  %v407 = vmax.f32 %v370, 0.0
  %408 = vst [vmem:[%s3] sm:$0xff] %v372
  %409 = vst [vmem:[%s3 + $0x8] sm:$0xff] %v373
  %410 = vst [vmem:[%s3 + $0x10] sm:$0xff] %v374
  %411 = vst [vmem:[%s3 + $0x18] sm:$0xff] %v375
  %412 = vst [vmem:[%s3 + $0x20] sm:$0xff] %v376
  %413 = vst [vmem:[%s3 + $0x28] sm:$0xff] %v377
  %414 = vst [vmem:[%s3 + $0x30] sm:$0xff] %v378
  %415 = vst [vmem:[%s3 + $0x38] sm:$0xff] %v379
  %416 = vst [vmem:[%s3 + $0x40] sm:$0xff] %v380
  %417 = vst [vmem:[%s3 + $0x48] sm:$0xff] %v381
  %418 = vst [vmem:[%s3 + $0x50] sm:$0xff] %v382
  %419 = vst [vmem:[%s3 + $0x58] sm:$0xff] %v383
  %420 = vst [vmem:[%s3 + $0x60] sm:$0xff] %v384
  %421 = vst [vmem:[%s3 + $0x68] sm:$0xff] %v385
  %422 = vst [vmem:[%s3 + $0x70] sm:$0xff] %v386
  %423 = vst [vmem:[%s3 + $0x78] sm:$0xff] %v387
  %424 = vst [vmem:[%s3 + $0x80] sm:$0xff] %v388
  %425 = vst [vmem:[%s3 + $0x88] sm:$0xff] %v389
  %426 = vst [vmem:[%s3 + $0x90] sm:$0xff] %v390
  %427 = vst [vmem:[%s3 + $0x98] sm:$0xff] %v391
  %428 = vst [vmem:[%s3 + $0xa0] sm:$0xff] %v392
  %429 = vst [vmem:[%s3 + $0xa8] sm:$0xff] %v393
  %430 = vst [vmem:[%s3 + $0xb0] sm:$0xff] %v394
  %431 = vst [vmem:[%s3 + $0xb8] sm:$0xff] %v395
  %432 = vst [vmem:[%s3 + $0xc0] sm:$0xff] %v396
  %433 = vst [vmem:[%s3 + $0xc8] sm:$0xff] %v397
  %434 = vst [vmem:[%s3 + $0xd0] sm:$0xff] %v398
  %435 = vst [vmem:[%s3 + $0xd8] sm:$0xff] %v399
  %436 = vst [vmem:[%s3 + $0xe0] sm:$0xff] %v400
  %437 = vst [vmem:[%s3 + $0xe8] sm:$0xff] %v401
  %438 = vst [vmem:[%s3 + $0xf0] sm:$0xff] %v402
  %439 = vst [vmem:[%s3 + $0xf8] sm:$0xff] %v403
  %440 = vst [vmem:[%s3 + $0x100] sm:$0xff] %v404
  %441 = vst [vmem:[%s3 + $0x108] sm:$0xff] %v405
  %442 = vst [vmem:[%s3 + $0x110] sm:$0xff] %v406
  %443 = vst [vmem:[%s3 + $0x118] sm:$0xff] %v407
  // Predicated region
  $region14: #{denet_forward.4} parent=0 // pred_check
    _
  $region15: #{denet_forward.4} parent=0 // pred_check_branch
    %445 = sbr.rel (0) target = $region17
  $region16: #{denet_forward.4} parent=0 // pred_region
    _
  $region17: #{denet_forward.4} parent=0 // pred_fallthru
    _
  // Predicated region
  $region18: #{denet_forward.4} parent=0 // pred_check
    _
  $region19: #{denet_forward.4} parent=0 // pred_check_branch
    %447 = sbr.rel (0) target = $region21
  $region20: #{denet_forward.4} parent=0 // pred_region
    _
  $region21: #{denet_forward.4} parent=0 // pred_fallthru
    _

// kernel: denet_forward.5
$region0: #{denet_forward.5}
  #allocation0 [shape = 'u32[]', space=smem, size = 0x4, offset = 0x4, fixed_abs, tag = 'smem constant byte address 0x4 - core index']
  #allocation1 [shape = 'u32[72,128]{1,0:T(1,128)}', space=vmem, size = 0x9000, scoped, tag = 'internal scratch']
  %s0 = inlined_call_operand.vmem [shape: f32[56,512], index: 0, kind: input, shape index: {}]
  %s1 = inlined_call_operand.vmem [shape: f32[512,128], index: 1, kind: input, shape index: {}]
  %s2 = inlined_call_operand.vmem [shape: f32[1,128], index: 2, kind: input, shape index: {}]
  %s3 = inlined_call_operand.vmem [shape: f32[56,128], index: 3, kind: output, shape index: {}]
  %s4 = sld [smem:[#allocation0]]
  $region22: #{denet_forward.5} parent=0
    _
  %s6 = ssub.s32 1, %s4
  %s7 = scalar_select 0, %s6, %s4
  // Predicated region
  $region2: #{denet_forward.5} parent=0 // pred_check
    _
  $region3: #{denet_forward.5} parent=0 // pred_check_branch
    %9 = sbr.rel (0) target = $region5
  $region4: #{denet_forward.5} parent=0 // pred_region
    _
  $region5: #{denet_forward.5} parent=0 // pred_fallthru
    _
  // Predicated region
  $region6: #{denet_forward.5} parent=0 // pred_check
    _
  $region7: #{denet_forward.5} parent=0 // pred_check_branch
    %11 = sbr.rel (0) target = $region9
  $region8: #{denet_forward.5} parent=0 // pred_region
    _
  $region9: #{denet_forward.5} parent=0 // pred_fallthru
    _
  // Predicated region
  $region10: #{denet_forward.5} parent=0 // pred_check
    _
  $region11: #{denet_forward.5} parent=0 // pred_check_branch
    %13 = sbr.rel (0) target = $region13
  $region12: #{denet_forward.5} parent=0 // pred_region
    _
  $region13: #{denet_forward.5} parent=0 // pred_fallthru
    _
  %v14 = vld [vmem:[%s0] sm:$0xff]
  %v15 = vld [vmem:[%s0 + $0x8] sm:$0xff]
  %v16 = vld [vmem:[%s0 + $0x10] sm:$0xff]
  %v17 = vld [vmem:[%s0 + $0x18] sm:$0xff]
  %v18 = vld [vmem:[%s0 + $0x20] sm:$0xff]
  %v19 = vld [vmem:[%s0 + $0x28] sm:$0xff]
  %v20 = vld [vmem:[%s0 + $0x30] sm:$0xff]
  %v21 = vld [vmem:[%s0 + $0x38] sm:$0xff]
  %v22 = vld [vmem:[%s0 + $0x40] sm:$0xff]
  %v23 = vld [vmem:[%s0 + $0x48] sm:$0xff]
  %v24 = vld [vmem:[%s0 + $0x50] sm:$0xff]
  %v25 = vld [vmem:[%s0 + $0x58] sm:$0xff]
  %v26 = vld [vmem:[%s0 + $0x60] sm:$0xff]
  %v27 = vld [vmem:[%s0 + $0x68] sm:$0xff]
  %v28 = vld [vmem:[%s0 + $0x70] sm:$0xff]
  %v29 = vld [vmem:[%s0 + $0x78] sm:$0xff]
  %v30 = vld [vmem:[%s0 + $0x80] sm:$0xff]
  %v31 = vld [vmem:[%s0 + $0x88] sm:$0xff]
  %v32 = vld [vmem:[%s0 + $0x90] sm:$0xff]
  %v33 = vld [vmem:[%s0 + $0x98] sm:$0xff]
  %v34 = vld [vmem:[%s0 + $0xa0] sm:$0xff]
  %v35 = vld [vmem:[%s0 + $0xa8] sm:$0xff]
  %v36 = vld [vmem:[%s0 + $0xb0] sm:$0xff]
  %v37 = vld [vmem:[%s0 + $0xb8] sm:$0xff]
  %v38 = vld [vmem:[%s0 + $0xc0] sm:$0xff]
  %v39 = vld [vmem:[%s0 + $0xc8] sm:$0xff]
  %v40 = vld [vmem:[%s0 + $0xd0] sm:$0xff]
  %v41 = vld [vmem:[%s0 + $0xd8] sm:$0xff]
  %v42 = vld [vmem:[%s1] sm:$0xff]
  %v43 = vld [vmem:[%s1 + $0x8] sm:$0xff]
  %v44 = vld [vmem:[%s1 + $0x10] sm:$0xff]
  %v45 = vld [vmem:[%s1 + $0x18] sm:$0xff]
  %v46 = vld [vmem:[%s1 + $0x20] sm:$0xff]
  %v47 = vld [vmem:[%s1 + $0x28] sm:$0xff]
  %v48 = vld [vmem:[%s1 + $0x30] sm:$0xff]
  %v49 = vld [vmem:[%s1 + $0x38] sm:$0xff]
  %v50 = vld [vmem:[%s1 + $0x40] sm:$0xff]
  %v51 = vld [vmem:[%s1 + $0x48] sm:$0xff]
  %v52 = vld [vmem:[%s1 + $0x50] sm:$0xff]
  %v53 = vld [vmem:[%s1 + $0x58] sm:$0xff]
  %v54 = vld [vmem:[%s1 + $0x60] sm:$0xff]
  %v55 = vld [vmem:[%s1 + $0x68] sm:$0xff]
  %v56 = vld [vmem:[%s1 + $0x70] sm:$0xff]
  %v57 = vld [vmem:[%s1 + $0x78] sm:$0xff]
  %v58 = vld [vmem:[%s1 + $0x80] sm:$0xff]
  %v59 = vld [vmem:[%s1 + $0x88] sm:$0xff]
  %v60 = vld [vmem:[%s1 + $0x90] sm:$0xff]
  %v61 = vld [vmem:[%s1 + $0x98] sm:$0xff]
  %v62 = vld [vmem:[%s1 + $0xa0] sm:$0xff]
  %v63 = vld [vmem:[%s1 + $0xa8] sm:$0xff]
  %v64 = vld [vmem:[%s1 + $0xb0] sm:$0xff]
  %v65 = vld [vmem:[%s1 + $0xb8] sm:$0xff]
  %v66 = vld [vmem:[%s1 + $0xc0] sm:$0xff]
  %v67 = vld [vmem:[%s1 + $0xc8] sm:$0xff]
  %v68 = vld [vmem:[%s1 + $0xd0] sm:$0xff]
  %v69 = vld [vmem:[%s1 + $0xd8] sm:$0xff]
  %v70 = vld [vmem:[%s1 + $0xe0] sm:$0xff]
  %v71 = vld [vmem:[%s1 + $0xe8] sm:$0xff]
  %v72 = vld [vmem:[%s1 + $0xf0] sm:$0xff]
  %v73 = vld [vmem:[%s1 + $0xf8] sm:$0xff]
  %v74 = vld [vmem:[%s1 + $0x100] sm:$0xff]
  %v75 = vld [vmem:[%s1 + $0x108] sm:$0xff]
  %v76 = vld [vmem:[%s1 + $0x110] sm:$0xff]
  %v77 = vld [vmem:[%s1 + $0x118] sm:$0xff]
  %v78 = vld [vmem:[%s1 + $0x120] sm:$0xff]
  %v79 = vld [vmem:[%s1 + $0x128] sm:$0xff]
  %v80 = vld [vmem:[%s1 + $0x130] sm:$0xff]
  %v81 = vld [vmem:[%s1 + $0x138] sm:$0xff]
  %v82 = vld [vmem:[%s1 + $0x140] sm:$0xff]
  %v83 = vld [vmem:[%s1 + $0x148] sm:$0xff]
  %v84 = vld [vmem:[%s1 + $0x150] sm:$0xff]
  %v85 = vld [vmem:[%s1 + $0x158] sm:$0xff]
  %v86 = vld [vmem:[%s1 + $0x160] sm:$0xff]
  %v87 = vld [vmem:[%s1 + $0x168] sm:$0xff]
  %v88 = vld [vmem:[%s1 + $0x170] sm:$0xff]
  %v89 = vld [vmem:[%s1 + $0x178] sm:$0xff]
  %v90 = vld [vmem:[%s1 + $0x180] sm:$0xff]
  %v91 = vld [vmem:[%s1 + $0x188] sm:$0xff]
  %v92 = vld [vmem:[%s1 + $0x190] sm:$0xff]
  %v93 = vld [vmem:[%s1 + $0x198] sm:$0xff]
  %v94 = vld [vmem:[%s1 + $0x1a0] sm:$0xff]
  %v95 = vld [vmem:[%s1 + $0x1a8] sm:$0xff]
  %v96 = vld [vmem:[%s1 + $0x1b0] sm:$0xff]
  %v97 = vld [vmem:[%s1 + $0x1b8] sm:$0xff]
  %v98 = vld [vmem:[%s1 + $0x1c0] sm:$0xff]
  %v99 = vld [vmem:[%s1 + $0x1c8] sm:$0xff]
  %v100 = vld [vmem:[%s1 + $0x1d0] sm:$0xff]
  %v101 = vld [vmem:[%s1 + $0x1d8] sm:$0xff]
  %v102 = vld [vmem:[%s1 + $0x1e0] sm:$0xff]
  %v103 = vld [vmem:[%s1 + $0x1e8] sm:$0xff]
  %v104 = vld [vmem:[%s1 + $0x1f0] sm:$0xff]
  %v105 = vld [vmem:[%s1 + $0x1f8] sm:$0xff]
  %v106 = vld [vmem:[%s2] sm:$0x1]
  %v108 = vperm.slane %v106, 0
  %110 = vmatpush.msra.mxu0 %v57
  %111 = vmatpush.msra.mxu0 %v56
  %112 = vmatpush.msra.mxu0 %v55
  %113 = vmatpush.msra.mxu0 %v54
  %114 = vmatpush.msra.mxu0 %v53
  %115 = vmatpush.msra.mxu0 %v52
  %116 = vmatpush.msra.mxu0 %v51
  %117 = vmatpush.msra.mxu0 %v50
  %118 = vmatpush.msra.mxu0 %v49
  %119 = vmatpush.msra.mxu0 %v48
  %120 = vmatpush.msra.mxu0 %v47
  %121 = vmatpush.msra.mxu0 %v46
  %122 = vmatpush.msra.mxu0 %v45
  %123 = vmatpush.msra.mxu0 %v44
  %124 = vmatpush.msra.mxu0 %v43
  %125 = vmatpush.msra.mxu0 %v42
  %126 = vmatmul.f32.gmra.mxu0 %v14
  %v127 = vpop.f32.mrf.mxu0
  %v128 = vadd.f32 %v108, %v127
  %129 = vmatmul.f32.gmra.mxu0 %v18
  %v130 = vpop.f32.mrf.mxu0
  %v131 = vadd.f32 %v108, %v130
  %132 = vmatmul.f32.gmra.mxu0 %v22
  %v133 = vpop.f32.mrf.mxu0
  %v134 = vadd.f32 %v108, %v133
  %135 = vmatmul.f32.gmra.mxu0 %v26
  %v136 = vpop.f32.mrf.mxu0
  %v137 = vadd.f32 %v108, %v136
  %138 = vmatmul.f32.gmra.mxu0 %v30
  %v139 = vpop.f32.mrf.mxu0
  %v140 = vadd.f32 %v108, %v139
  %141 = vmatmul.f32.gmra.mxu0 %v34
  %v142 = vpop.f32.mrf.mxu0
  %v143 = vadd.f32 %v108, %v142
  %144 = vmatmul.f32.gmra.mxu0 %v38
  %v145 = vpop.f32.mrf.mxu0
  %v146 = vadd.f32 %v108, %v145
  %147 = vdwg.mxu0
  %148 = vmatpush.msra.mxu0 %v73
  %149 = vmatpush.msra.mxu0 %v72
  %150 = vmatpush.msra.mxu0 %v71
  %151 = vmatpush.msra.mxu0 %v70
  %152 = vmatpush.msra.mxu0 %v69
  %153 = vmatpush.msra.mxu0 %v68
  %154 = vmatpush.msra.mxu0 %v67
  %155 = vmatpush.msra.mxu0 %v66
  %156 = vmatpush.msra.mxu0 %v65
  %157 = vmatpush.msra.mxu0 %v64
  %158 = vmatpush.msra.mxu0 %v63
  %159 = vmatpush.msra.mxu0 %v62
  %160 = vmatpush.msra.mxu0 %v61
  %161 = vmatpush.msra.mxu0 %v60
  %162 = vmatpush.msra.mxu0 %v59
  %163 = vmatpush.msra.mxu0 %v58
  %164 = vmatmul.f32.gmra.mxu0 %v15
  %v165 = vpop.f32.mrf.mxu0
  %v166 = vadd.f32 %v128, %v165
  %167 = vmatmul.f32.gmra.mxu0 %v19
  %v168 = vpop.f32.mrf.mxu0
  %v169 = vadd.f32 %v131, %v168
  %170 = vmatmul.f32.gmra.mxu0 %v23
  %v171 = vpop.f32.mrf.mxu0
  %v172 = vadd.f32 %v134, %v171
  %173 = vmatmul.f32.gmra.mxu0 %v27
  %v174 = vpop.f32.mrf.mxu0
  %v175 = vadd.f32 %v137, %v174
  %176 = vmatmul.f32.gmra.mxu0 %v31
  %v177 = vpop.f32.mrf.mxu0
  %v178 = vadd.f32 %v140, %v177
  %179 = vmatmul.f32.gmra.mxu0 %v35
  %v180 = vpop.f32.mrf.mxu0
  %v181 = vadd.f32 %v143, %v180
  %182 = vmatmul.f32.gmra.mxu0 %v39
  %v183 = vpop.f32.mrf.mxu0
  %v184 = vadd.f32 %v146, %v183
  %185 = vdwg.mxu0
  %186 = vmatpush.msra.mxu0 %v89
  %187 = vmatpush.msra.mxu0 %v88
  %188 = vmatpush.msra.mxu0 %v87
  %189 = vmatpush.msra.mxu0 %v86
  %190 = vmatpush.msra.mxu0 %v85
  %191 = vmatpush.msra.mxu0 %v84
  %192 = vmatpush.msra.mxu0 %v83
  %193 = vmatpush.msra.mxu0 %v82
  %194 = vmatpush.msra.mxu0 %v81
  %195 = vmatpush.msra.mxu0 %v80
  %196 = vmatpush.msra.mxu0 %v79
  %197 = vmatpush.msra.mxu0 %v78
  %198 = vmatpush.msra.mxu0 %v77
  %199 = vmatpush.msra.mxu0 %v76
  %200 = vmatpush.msra.mxu0 %v75
  %201 = vmatpush.msra.mxu0 %v74
  %202 = vmatmul.f32.gmra.mxu0 %v16
  %v203 = vpop.f32.mrf.mxu0
  %v204 = vadd.f32 %v166, %v203
  %205 = vmatmul.f32.gmra.mxu0 %v20
  %v206 = vpop.f32.mrf.mxu0
  %v207 = vadd.f32 %v169, %v206
  %208 = vmatmul.f32.gmra.mxu0 %v24
  %v209 = vpop.f32.mrf.mxu0
  %v210 = vadd.f32 %v172, %v209
  %211 = vmatmul.f32.gmra.mxu0 %v28
  %v212 = vpop.f32.mrf.mxu0
  %v213 = vadd.f32 %v175, %v212
  %214 = vmatmul.f32.gmra.mxu0 %v32
  %v215 = vpop.f32.mrf.mxu0
  %v216 = vadd.f32 %v178, %v215
  %217 = vmatmul.f32.gmra.mxu0 %v36
  %v218 = vpop.f32.mrf.mxu0
  %v219 = vadd.f32 %v181, %v218
  %220 = vmatmul.f32.gmra.mxu0 %v40
  %v221 = vpop.f32.mrf.mxu0
  %v222 = vadd.f32 %v184, %v221
  %223 = vdwg.mxu0
  %224 = vmatpush.msra.mxu0 %v105
  %225 = vmatpush.msra.mxu0 %v104
  %226 = vmatpush.msra.mxu0 %v103
  %227 = vmatpush.msra.mxu0 %v102
  %228 = vmatpush.msra.mxu0 %v101
  %229 = vmatpush.msra.mxu0 %v100
  %230 = vmatpush.msra.mxu0 %v99
  %231 = vmatpush.msra.mxu0 %v98
  %232 = vmatpush.msra.mxu0 %v97
  %233 = vmatpush.msra.mxu0 %v96
  %234 = vmatpush.msra.mxu0 %v95
  %235 = vmatpush.msra.mxu0 %v94
  %236 = vmatpush.msra.mxu0 %v93
  %237 = vmatpush.msra.mxu0 %v92
  %238 = vmatpush.msra.mxu0 %v91
  %239 = vmatpush.msra.mxu0 %v90
  %240 = vmatmul.f32.gmra.mxu0 %v17
  %v241 = vpop.f32.mrf.mxu0
  %v242 = vadd.f32 %v204, %v241
  %243 = vmatmul.f32.gmra.mxu0 %v21
  %v244 = vpop.f32.mrf.mxu0
  %v245 = vadd.f32 %v207, %v244
  %246 = vmatmul.f32.gmra.mxu0 %v25
  %v247 = vpop.f32.mrf.mxu0
  %v248 = vadd.f32 %v210, %v247
  %249 = vmatmul.f32.gmra.mxu0 %v29
  %v250 = vpop.f32.mrf.mxu0
  %v251 = vadd.f32 %v213, %v250
  %252 = vmatmul.f32.gmra.mxu0 %v33
  %v253 = vpop.f32.mrf.mxu0
  %v254 = vadd.f32 %v216, %v253
  %255 = vmatmul.f32.gmra.mxu0 %v37
  %v256 = vpop.f32.mrf.mxu0
  %v257 = vadd.f32 %v219, %v256
  %258 = vmatmul.f32.gmra.mxu0 %v41
  %v259 = vpop.f32.mrf.mxu0
  %v260 = vadd.f32 %v222, %v259
  %261 = vdwg.mxu0
  %v262 = vmax.f32 %v242, 0.0
  %v263 = vmax.f32 %v245, 0.0
  %v264 = vmax.f32 %v248, 0.0
  %v265 = vmax.f32 %v251, 0.0
  %v266 = vmax.f32 %v254, 0.0
  %v267 = vmax.f32 %v257, 0.0
  %v268 = vmax.f32 %v260, 0.0
  %269 = vst [vmem:[%s3] sm:$0xff] %v262
  %270 = vst [vmem:[%s3 + $0x8] sm:$0xff] %v263
  %271 = vst [vmem:[%s3 + $0x10] sm:$0xff] %v264
  %272 = vst [vmem:[%s3 + $0x18] sm:$0xff] %v265
  %273 = vst [vmem:[%s3 + $0x20] sm:$0xff] %v266
  %274 = vst [vmem:[%s3 + $0x28] sm:$0xff] %v267
  %275 = vst [vmem:[%s3 + $0x30] sm:$0xff] %v268
  // Predicated region
  $region14: #{denet_forward.5} parent=0 // pred_check
    _
  $region15: #{denet_forward.5} parent=0 // pred_check_branch
    %277 = sbr.rel (0) target = $region17
  $region16: #{denet_forward.5} parent=0 // pred_region
    _
  $region17: #{denet_forward.5} parent=0 // pred_fallthru
    _
  // Predicated region
  $region18: #{denet_forward.5} parent=0 // pred_check
    _
  $region19: #{denet_forward.5} parent=0 // pred_check_branch
    %279 = sbr.rel (0) target = $region21
  $region20: #{denet_forward.5} parent=0 // pred_region
    _
  $region21: #{denet_forward.5} parent=0 // pred_fallthru
    _

// kernel: denet_forward.6
$region0: #{denet_forward.6}
  #allocation0 [shape = 'u32[]', space=smem, size = 0x4, offset = 0x4, fixed_abs, tag = 'smem constant byte address 0x4 - core index']
  #allocation1 [shape = 'u32[72,128]{1,0:T(1,128)}', space=vmem, size = 0x9000, scoped, tag = 'internal scratch']
  %s0 = inlined_call_operand.vmem [shape: f32[24,576], index: 0, kind: input, shape index: {}]
  %s1 = inlined_call_operand.vmem [shape: f32[576,128], index: 1, kind: input, shape index: {}]
  %s2 = inlined_call_operand.vmem [shape: f32[1,128], index: 2, kind: input, shape index: {}]
  %s3 = inlined_call_operand.vmem [shape: f32[24,128], index: 3, kind: output, shape index: {}]
  %s4 = sld [smem:[#allocation0]]
  $region22: #{denet_forward.6} parent=0
    _
  %s6 = ssub.s32 1, %s4
  %s7 = scalar_select 0, %s6, %s4
  // Predicated region
  $region2: #{denet_forward.6} parent=0 // pred_check
    _
  $region3: #{denet_forward.6} parent=0 // pred_check_branch
    %9 = sbr.rel (0) target = $region5
  $region4: #{denet_forward.6} parent=0 // pred_region
    _
  $region5: #{denet_forward.6} parent=0 // pred_fallthru
    _
  // Predicated region
  $region6: #{denet_forward.6} parent=0 // pred_check
    _
  $region7: #{denet_forward.6} parent=0 // pred_check_branch
    %11 = sbr.rel (0) target = $region9
  $region8: #{denet_forward.6} parent=0 // pred_region
    _
  $region9: #{denet_forward.6} parent=0 // pred_fallthru
    _
  // Predicated region
  $region10: #{denet_forward.6} parent=0 // pred_check
    _
  $region11: #{denet_forward.6} parent=0 // pred_check_branch
    %13 = sbr.rel (0) target = $region13
  $region12: #{denet_forward.6} parent=0 // pred_region
    _
  $region13: #{denet_forward.6} parent=0 // pred_fallthru
    _
  %v14 = vld [vmem:[%s0] sm:$0xff]
  %v15 = vld [vmem:[%s0 + $0x8] sm:$0xff]
  %v16 = vld [vmem:[%s0 + $0x10] sm:$0xff]
  %v17 = vld [vmem:[%s0 + $0x18] sm:$0xff]
  %v18 = vld [vmem:[%s0 + $0x20] sm:$0xff]
  %v19 = vld [vmem:[%s0 + $0x28] sm:$0xff]
  %v20 = vld [vmem:[%s0 + $0x30] sm:$0xff]
  %v21 = vld [vmem:[%s0 + $0x38] sm:$0xff]
  %v22 = vld [vmem:[%s0 + $0x40] sm:$0xff]
  %v23 = vld [vmem:[%s0 + $0x48] sm:$0xff]
  %v24 = vld [vmem:[%s0 + $0x50] sm:$0xff]
  %v25 = vld [vmem:[%s0 + $0x58] sm:$0xff]
  %v26 = vld [vmem:[%s0 + $0x60] sm:$0xff]
  %v27 = vld [vmem:[%s0 + $0x68] sm:$0xff]
  %v28 = vld [vmem:[%s0 + $0x70] sm:$0xff]
  %v29 = vld [vmem:[%s1] sm:$0xff]
  %v30 = vld [vmem:[%s1 + $0x8] sm:$0xff]
  %v31 = vld [vmem:[%s1 + $0x10] sm:$0xff]
  %v32 = vld [vmem:[%s1 + $0x18] sm:$0xff]
  %v33 = vld [vmem:[%s1 + $0x20] sm:$0xff]
  %v34 = vld [vmem:[%s1 + $0x28] sm:$0xff]
  %v35 = vld [vmem:[%s1 + $0x30] sm:$0xff]
  %v36 = vld [vmem:[%s1 + $0x38] sm:$0xff]
  %v37 = vld [vmem:[%s1 + $0x40] sm:$0xff]
  %v38 = vld [vmem:[%s1 + $0x48] sm:$0xff]
  %v39 = vld [vmem:[%s1 + $0x50] sm:$0xff]
  %v40 = vld [vmem:[%s1 + $0x58] sm:$0xff]
  %v41 = vld [vmem:[%s1 + $0x60] sm:$0xff]
  %v42 = vld [vmem:[%s1 + $0x68] sm:$0xff]
  %v43 = vld [vmem:[%s1 + $0x70] sm:$0xff]
  %v44 = vld [vmem:[%s1 + $0x78] sm:$0xff]
  %v45 = vld [vmem:[%s1 + $0x80] sm:$0xff]
  %v46 = vld [vmem:[%s1 + $0x88] sm:$0xff]
  %v47 = vld [vmem:[%s1 + $0x90] sm:$0xff]
  %v48 = vld [vmem:[%s1 + $0x98] sm:$0xff]
  %v49 = vld [vmem:[%s1 + $0xa0] sm:$0xff]
  %v50 = vld [vmem:[%s1 + $0xa8] sm:$0xff]
  %v51 = vld [vmem:[%s1 + $0xb0] sm:$0xff]
  %v52 = vld [vmem:[%s1 + $0xb8] sm:$0xff]
  %v53 = vld [vmem:[%s1 + $0xc0] sm:$0xff]
  %v54 = vld [vmem:[%s1 + $0xc8] sm:$0xff]
  %v55 = vld [vmem:[%s1 + $0xd0] sm:$0xff]
  %v56 = vld [vmem:[%s1 + $0xd8] sm:$0xff]
  %v57 = vld [vmem:[%s1 + $0xe0] sm:$0xff]
  %v58 = vld [vmem:[%s1 + $0xe8] sm:$0xff]
  %v59 = vld [vmem:[%s1 + $0xf0] sm:$0xff]
  %v60 = vld [vmem:[%s1 + $0xf8] sm:$0xff]
  %v61 = vld [vmem:[%s1 + $0x100] sm:$0xff]
  %v62 = vld [vmem:[%s1 + $0x108] sm:$0xff]
  %v63 = vld [vmem:[%s1 + $0x110] sm:$0xff]
  %v64 = vld [vmem:[%s1 + $0x118] sm:$0xff]
  %v65 = vld [vmem:[%s1 + $0x120] sm:$0xff]
  %v66 = vld [vmem:[%s1 + $0x128] sm:$0xff]
  %v67 = vld [vmem:[%s1 + $0x130] sm:$0xff]
  %v68 = vld [vmem:[%s1 + $0x138] sm:$0xff]
  %v69 = vld [vmem:[%s1 + $0x140] sm:$0xff]
  %v70 = vld [vmem:[%s1 + $0x148] sm:$0xff]
  %v71 = vld [vmem:[%s1 + $0x150] sm:$0xff]
  %v72 = vld [vmem:[%s1 + $0x158] sm:$0xff]
  %v73 = vld [vmem:[%s1 + $0x160] sm:$0xff]
  %v74 = vld [vmem:[%s1 + $0x168] sm:$0xff]
  %v75 = vld [vmem:[%s1 + $0x170] sm:$0xff]
  %v76 = vld [vmem:[%s1 + $0x178] sm:$0xff]
  %v77 = vld [vmem:[%s1 + $0x180] sm:$0xff]
  %v78 = vld [vmem:[%s1 + $0x188] sm:$0xff]
  %v79 = vld [vmem:[%s1 + $0x190] sm:$0xff]
  %v80 = vld [vmem:[%s1 + $0x198] sm:$0xff]
  %v81 = vld [vmem:[%s1 + $0x1a0] sm:$0xff]
  %v82 = vld [vmem:[%s1 + $0x1a8] sm:$0xff]
  %v83 = vld [vmem:[%s1 + $0x1b0] sm:$0xff]
  %v84 = vld [vmem:[%s1 + $0x1b8] sm:$0xff]
  %v85 = vld [vmem:[%s1 + $0x1c0] sm:$0xff]
  %v86 = vld [vmem:[%s1 + $0x1c8] sm:$0xff]
  %v87 = vld [vmem:[%s1 + $0x1d0] sm:$0xff]
  %v88 = vld [vmem:[%s1 + $0x1d8] sm:$0xff]
  %v89 = vld [vmem:[%s1 + $0x1e0] sm:$0xff]
  %v90 = vld [vmem:[%s1 + $0x1e8] sm:$0xff]
  %v91 = vld [vmem:[%s1 + $0x1f0] sm:$0xff]
  %v92 = vld [vmem:[%s1 + $0x1f8] sm:$0xff]
  %v93 = vld [vmem:[%s1 + $0x200] sm:$0xff]
  %v94 = vld [vmem:[%s1 + $0x208] sm:$0xff]
  %v95 = vld [vmem:[%s1 + $0x210] sm:$0xff]
  %v96 = vld [vmem:[%s1 + $0x218] sm:$0xff]
  %v97 = vld [vmem:[%s1 + $0x220] sm:$0xff]
  %v98 = vld [vmem:[%s1 + $0x228] sm:$0xff]
  %v99 = vld [vmem:[%s1 + $0x230] sm:$0xff]
  %v100 = vld [vmem:[%s1 + $0x238] sm:$0xff]
  %v101 = vld [vmem:[%s2] sm:$0x1]
  %v103 = vperm.slane %v101, 0
  %vm105 = vcmask 523264
  %v107 = vsel %vm105, %v18, 0
  %v110 = vsel %vm105, %v23, 0
  %v113 = vsel %vm105, %v28, 0
  %115 = vmatpush.msra.mxu0 %v44
  %116 = vmatpush.msra.mxu0 %v43
  %117 = vmatpush.msra.mxu0 %v42
  %118 = vmatpush.msra.mxu0 %v41
  %119 = vmatpush.msra.mxu0 %v40
  %120 = vmatpush.msra.mxu0 %v39
  %121 = vmatpush.msra.mxu0 %v38
  %122 = vmatpush.msra.mxu0 %v37
  %123 = vmatpush.msra.mxu0 %v36
  %124 = vmatpush.msra.mxu0 %v35
  %125 = vmatpush.msra.mxu0 %v34
  %126 = vmatpush.msra.mxu0 %v33
  %127 = vmatpush.msra.mxu0 %v32
  %128 = vmatpush.msra.mxu0 %v31
  %129 = vmatpush.msra.mxu0 %v30
  %130 = vmatpush.msra.mxu0 %v29
  %131 = vmatmul.f32.gmra.mxu0 %v14
  %v132 = vpop.f32.mrf.mxu0
  %v133 = vadd.f32 %v103, %v132
  %134 = vmatmul.f32.gmra.mxu0 %v19
  %v135 = vpop.f32.mrf.mxu0
  %v136 = vadd.f32 %v103, %v135
  %137 = vmatmul.f32.gmra.mxu0 %v24
  %v138 = vpop.f32.mrf.mxu0
  %v139 = vadd.f32 %v103, %v138
  %140 = vdwg.mxu0
  %141 = vmatpush.msra.mxu0 %v60
  %142 = vmatpush.msra.mxu0 %v59
  %143 = vmatpush.msra.mxu0 %v58
  %144 = vmatpush.msra.mxu0 %v57
  %145 = vmatpush.msra.mxu0 %v56
  %146 = vmatpush.msra.mxu0 %v55
  %147 = vmatpush.msra.mxu0 %v54
  %148 = vmatpush.msra.mxu0 %v53
  %149 = vmatpush.msra.mxu0 %v52
  %150 = vmatpush.msra.mxu0 %v51
  %151 = vmatpush.msra.mxu0 %v50
  %152 = vmatpush.msra.mxu0 %v49
  %153 = vmatpush.msra.mxu0 %v48
  %154 = vmatpush.msra.mxu0 %v47
  %155 = vmatpush.msra.mxu0 %v46
  %156 = vmatpush.msra.mxu0 %v45
  %157 = vmatmul.f32.gmra.mxu0 %v15
  %v158 = vpop.f32.mrf.mxu0
  %v159 = vadd.f32 %v133, %v158
  %160 = vmatmul.f32.gmra.mxu0 %v20
  %v161 = vpop.f32.mrf.mxu0
  %v162 = vadd.f32 %v136, %v161
  %163 = vmatmul.f32.gmra.mxu0 %v25
  %v164 = vpop.f32.mrf.mxu0
  %v165 = vadd.f32 %v139, %v164
  %166 = vdwg.mxu0
  %167 = vmatpush.msra.mxu0 %v76
  %168 = vmatpush.msra.mxu0 %v75
  %169 = vmatpush.msra.mxu0 %v74
  %170 = vmatpush.msra.mxu0 %v73
  %171 = vmatpush.msra.mxu0 %v72
  %172 = vmatpush.msra.mxu0 %v71
  %173 = vmatpush.msra.mxu0 %v70
  %174 = vmatpush.msra.mxu0 %v69
  %175 = vmatpush.msra.mxu0 %v68
  %176 = vmatpush.msra.mxu0 %v67
  %177 = vmatpush.msra.mxu0 %v66
  %178 = vmatpush.msra.mxu0 %v65
  %179 = vmatpush.msra.mxu0 %v64
  %180 = vmatpush.msra.mxu0 %v63
  %181 = vmatpush.msra.mxu0 %v62
  %182 = vmatpush.msra.mxu0 %v61
  %183 = vmatmul.f32.gmra.mxu0 %v16
  %v184 = vpop.f32.mrf.mxu0
  %v185 = vadd.f32 %v159, %v184
  %186 = vmatmul.f32.gmra.mxu0 %v21
  %v187 = vpop.f32.mrf.mxu0
  %v188 = vadd.f32 %v162, %v187
  %189 = vmatmul.f32.gmra.mxu0 %v26
  %v190 = vpop.f32.mrf.mxu0
  %v191 = vadd.f32 %v165, %v190
  %192 = vdwg.mxu0
  %193 = vmatpush.msra.mxu0 %v92
  %194 = vmatpush.msra.mxu0 %v91
  %195 = vmatpush.msra.mxu0 %v90
  %196 = vmatpush.msra.mxu0 %v89
  %197 = vmatpush.msra.mxu0 %v88
  %198 = vmatpush.msra.mxu0 %v87
  %199 = vmatpush.msra.mxu0 %v86
  %200 = vmatpush.msra.mxu0 %v85
  %201 = vmatpush.msra.mxu0 %v84
  %202 = vmatpush.msra.mxu0 %v83
  %203 = vmatpush.msra.mxu0 %v82
  %204 = vmatpush.msra.mxu0 %v81
  %205 = vmatpush.msra.mxu0 %v80
  %206 = vmatpush.msra.mxu0 %v79
  %207 = vmatpush.msra.mxu0 %v78
  %208 = vmatpush.msra.mxu0 %v77
  %209 = vmatmul.f32.gmra.mxu0 %v17
  %v210 = vpop.f32.mrf.mxu0
  %v211 = vadd.f32 %v185, %v210
  %212 = vmatmul.f32.gmra.mxu0 %v22
  %v213 = vpop.f32.mrf.mxu0
  %v214 = vadd.f32 %v188, %v213
  %215 = vmatmul.f32.gmra.mxu0 %v27
  %v216 = vpop.f32.mrf.mxu0
  %v217 = vadd.f32 %v191, %v216
  %218 = vdwg.mxu0
  %219 = vmatpush.msra.mxu0 0.0
  %220 = vmatpush.msra.mxu0 0.0
  %221 = vmatpush.msra.mxu0 0.0
  %222 = vmatpush.msra.mxu0 0.0
  %223 = vmatpush.msra.mxu0 0.0
  %224 = vmatpush.msra.mxu0 0.0
  %225 = vmatpush.msra.mxu0 0.0
  %226 = vmatpush.msra.mxu0 0.0
  %227 = vmatpush.msra.mxu0 %v100
  %228 = vmatpush.msra.mxu0 %v99
  %229 = vmatpush.msra.mxu0 %v98
  %230 = vmatpush.msra.mxu0 %v97
  %231 = vmatpush.msra.mxu0 %v96
  %232 = vmatpush.msra.mxu0 %v95
  %233 = vmatpush.msra.mxu0 %v94
  %234 = vmatpush.msra.mxu0 %v93
  %235 = vmatmul.f32.gmra.mxu0 %v107
  %v236 = vpop.f32.mrf.mxu0
  %v237 = vadd.f32 %v211, %v236
  %238 = vmatmul.f32.gmra.mxu0 %v110
  %v239 = vpop.f32.mrf.mxu0
  %v240 = vadd.f32 %v214, %v239
  %241 = vmatmul.f32.gmra.mxu0 %v113
  %v242 = vpop.f32.mrf.mxu0
  %v243 = vadd.f32 %v217, %v242
  %244 = vdwg.mxu0
  %v245 = vmax.f32 %v237, 0.0
  %v246 = vmax.f32 %v240, 0.0
  %v247 = vmax.f32 %v243, 0.0
  %248 = vst [vmem:[%s3] sm:$0xff] %v245
  %249 = vst [vmem:[%s3 + $0x8] sm:$0xff] %v246
  %250 = vst [vmem:[%s3 + $0x10] sm:$0xff] %v247
  // Predicated region
  $region14: #{denet_forward.6} parent=0 // pred_check
    _
  $region15: #{denet_forward.6} parent=0 // pred_check_branch
    %252 = sbr.rel (0) target = $region17
  $region16: #{denet_forward.6} parent=0 // pred_region
    _
  $region17: #{denet_forward.6} parent=0 // pred_fallthru
    _
  // Predicated region
  $region18: #{denet_forward.6} parent=0 // pred_check
    _
  $region19: #{denet_forward.6} parent=0 // pred_check_branch
    %254 = sbr.rel (0) target = $region21
  $region20: #{denet_forward.6} parent=0 // pred_region
    _
  $region21: #{denet_forward.6} parent=0 // pred_fallthru
    _

// kernel: denet_forward.7
$region0: #{denet_forward.7}
  #allocation0 [shape = 'u32[]', space=smem, size = 0x4, offset = 0x4, fixed_abs, tag = 'smem constant byte address 0x4 - core index']
  #allocation1 [shape = 'u32[72,128]{1,0:T(1,128)}', space=vmem, size = 0x9000, scoped, tag = 'internal scratch']
  %s0 = inlined_call_operand.vmem [shape: f32[8,576], index: 0, kind: input, shape index: {}]
  %s1 = inlined_call_operand.vmem [shape: f32[576,512], index: 1, kind: input, shape index: {}]
  %s2 = inlined_call_operand.vmem [shape: f32[1,512], index: 2, kind: input, shape index: {}]
  %s3 = inlined_call_operand.vmem [shape: f32[512,48], index: 3, kind: input, shape index: {}]
  %s4 = inlined_call_operand.vmem [shape: f32[1,48], index: 4, kind: input, shape index: {}]
  %s5 = inlined_call_operand.vmem [shape: f32[512,6], index: 5, kind: input, shape index: {}]
  %s6 = inlined_call_operand.vmem [shape: f32[1,6], index: 6, kind: input, shape index: {}]
  %s7 = inlined_call_operand.vmem [shape: f32[48,128], index: 7, kind: input, shape index: {}]
  %s8 = inlined_call_operand.vmem [shape: f32[6,128], index: 8, kind: input, shape index: {}]
  %s9 = inlined_call_operand.vmem [shape: f32[8,128], index: 9, kind: output, shape index: {}]
  %s10 = sld [smem:[#allocation0]]
  $region46: #{denet_forward.7} parent=0
    _
  %s12 = ssub.s32 1, %s10
  %s13 = scalar_select 0, %s12, %s10
  // Predicated region
  $region2: #{denet_forward.7} parent=0 // pred_check
    _
  $region3: #{denet_forward.7} parent=0 // pred_check_branch
    %15 = sbr.rel (0) target = $region5
  $region4: #{denet_forward.7} parent=0 // pred_region
    _
  $region5: #{denet_forward.7} parent=0 // pred_fallthru
    _
  // Predicated region
  $region6: #{denet_forward.7} parent=0 // pred_check
    _
  $region7: #{denet_forward.7} parent=0 // pred_check_branch
    %17 = sbr.rel (0) target = $region9
  $region8: #{denet_forward.7} parent=0 // pred_region
    _
  $region9: #{denet_forward.7} parent=0 // pred_fallthru
    _
  // Predicated region
  $region10: #{denet_forward.7} parent=0 // pred_check
    _
  $region11: #{denet_forward.7} parent=0 // pred_check_branch
    %19 = sbr.rel (0) target = $region13
  $region12: #{denet_forward.7} parent=0 // pred_region
    _
  $region13: #{denet_forward.7} parent=0 // pred_fallthru
    _
  // Predicated region
  $region14: #{denet_forward.7} parent=0 // pred_check
    _
  $region15: #{denet_forward.7} parent=0 // pred_check_branch
    %21 = sbr.rel (0) target = $region17
  $region16: #{denet_forward.7} parent=0 // pred_region
    _
  $region17: #{denet_forward.7} parent=0 // pred_fallthru
    _
  // Predicated region
  $region18: #{denet_forward.7} parent=0 // pred_check
    _
  $region19: #{denet_forward.7} parent=0 // pred_check_branch
    %23 = sbr.rel (0) target = $region21
  $region20: #{denet_forward.7} parent=0 // pred_region
    _
  $region21: #{denet_forward.7} parent=0 // pred_fallthru
    _
  // Predicated region
  $region22: #{denet_forward.7} parent=0 // pred_check
    _
  $region23: #{denet_forward.7} parent=0 // pred_check_branch
    %25 = sbr.rel (0) target = $region25
  $region24: #{denet_forward.7} parent=0 // pred_region
    _
  $region25: #{denet_forward.7} parent=0 // pred_fallthru
    _
  // Predicated region
  $region26: #{denet_forward.7} parent=0 // pred_check
    _
  $region27: #{denet_forward.7} parent=0 // pred_check_branch
    %27 = sbr.rel (0) target = $region29
  $region28: #{denet_forward.7} parent=0 // pred_region
    _
  $region29: #{denet_forward.7} parent=0 // pred_fallthru
    _
  // Predicated region
  $region30: #{denet_forward.7} parent=0 // pred_check
    _
  $region31: #{denet_forward.7} parent=0 // pred_check_branch
    %29 = sbr.rel (0) target = $region33
  $region32: #{denet_forward.7} parent=0 // pred_region
    _
  $region33: #{denet_forward.7} parent=0 // pred_fallthru
    _
  // Predicated region
  $region34: #{denet_forward.7} parent=0 // pred_check
    _
  $region35: #{denet_forward.7} parent=0 // pred_check_branch
    %31 = sbr.rel (0) target = $region37
  $region36: #{denet_forward.7} parent=0 // pred_region
    _
  $region37: #{denet_forward.7} parent=0 // pred_fallthru
    _
  %v32 = vld [vmem:[%s0] sm:$0xff]
  %v33 = vld [vmem:[%s0 + $0x8] sm:$0xff]
  %v34 = vld [vmem:[%s0 + $0x10] sm:$0xff]
  %v35 = vld [vmem:[%s0 + $0x18] sm:$0xff]
  %v36 = vld [vmem:[%s0 + $0x20] sm:$0xff]
  %v37 = vld [vmem:[%s1] sm:$0xff]
  %v38 = vld [vmem:[%s1 + $0x8] sm:$0xff]
  %v39 = vld [vmem:[%s1 + $0x10] sm:$0xff]
  %v40 = vld [vmem:[%s1 + $0x18] sm:$0xff]
  %v41 = vld [vmem:[%s1 + $0x20] sm:$0xff]
  %v42 = vld [vmem:[%s1 + $0x28] sm:$0xff]
  %v43 = vld [vmem:[%s1 + $0x30] sm:$0xff]
  %v44 = vld [vmem:[%s1 + $0x38] sm:$0xff]
  %v45 = vld [vmem:[%s1 + $0x40] sm:$0xff]
  %v46 = vld [vmem:[%s1 + $0x48] sm:$0xff]
  %v47 = vld [vmem:[%s1 + $0x50] sm:$0xff]
  %v48 = vld [vmem:[%s1 + $0x58] sm:$0xff]
  %v49 = vld [vmem:[%s1 + $0x60] sm:$0xff]
  %v50 = vld [vmem:[%s1 + $0x68] sm:$0xff]
  %v51 = vld [vmem:[%s1 + $0x70] sm:$0xff]
  %v52 = vld [vmem:[%s1 + $0x78] sm:$0xff]
  %v53 = vld [vmem:[%s1 + $0x80] sm:$0xff]
  %v54 = vld [vmem:[%s1 + $0x88] sm:$0xff]
  %v55 = vld [vmem:[%s1 + $0x90] sm:$0xff]
  %v56 = vld [vmem:[%s1 + $0x98] sm:$0xff]
  %v57 = vld [vmem:[%s1 + $0xa0] sm:$0xff]
  %v58 = vld [vmem:[%s1 + $0xa8] sm:$0xff]
  %v59 = vld [vmem:[%s1 + $0xb0] sm:$0xff]
  %v60 = vld [vmem:[%s1 + $0xb8] sm:$0xff]
  %v61 = vld [vmem:[%s1 + $0xc0] sm:$0xff]
  %v62 = vld [vmem:[%s1 + $0xc8] sm:$0xff]
  %v63 = vld [vmem:[%s1 + $0xd0] sm:$0xff]
  %v64 = vld [vmem:[%s1 + $0xd8] sm:$0xff]
  %v65 = vld [vmem:[%s1 + $0xe0] sm:$0xff]
  %v66 = vld [vmem:[%s1 + $0xe8] sm:$0xff]
  %v67 = vld [vmem:[%s1 + $0xf0] sm:$0xff]
  %v68 = vld [vmem:[%s1 + $0xf8] sm:$0xff]
  %v69 = vld [vmem:[%s1 + $0x100] sm:$0xff]
  %v70 = vld [vmem:[%s1 + $0x108] sm:$0xff]
  %v71 = vld [vmem:[%s1 + $0x110] sm:$0xff]
  %v72 = vld [vmem:[%s1 + $0x118] sm:$0xff]
  %v73 = vld [vmem:[%s1 + $0x120] sm:$0xff]
  %v74 = vld [vmem:[%s1 + $0x128] sm:$0xff]
  %v75 = vld [vmem:[%s1 + $0x130] sm:$0xff]
  %v76 = vld [vmem:[%s1 + $0x138] sm:$0xff]
  %v77 = vld [vmem:[%s1 + $0x140] sm:$0xff]
  %v78 = vld [vmem:[%s1 + $0x148] sm:$0xff]
  %v79 = vld [vmem:[%s1 + $0x150] sm:$0xff]
  %v80 = vld [vmem:[%s1 + $0x158] sm:$0xff]
  %v81 = vld [vmem:[%s1 + $0x160] sm:$0xff]
  %v82 = vld [vmem:[%s1 + $0x168] sm:$0xff]
  %v83 = vld [vmem:[%s1 + $0x170] sm:$0xff]
  %v84 = vld [vmem:[%s1 + $0x178] sm:$0xff]
  %v85 = vld [vmem:[%s1 + $0x180] sm:$0xff]
  %v86 = vld [vmem:[%s1 + $0x188] sm:$0xff]
  %v87 = vld [vmem:[%s1 + $0x190] sm:$0xff]
  %v88 = vld [vmem:[%s1 + $0x198] sm:$0xff]
  %v89 = vld [vmem:[%s1 + $0x1a0] sm:$0xff]
  %v90 = vld [vmem:[%s1 + $0x1a8] sm:$0xff]
  %v91 = vld [vmem:[%s1 + $0x1b0] sm:$0xff]
  %v92 = vld [vmem:[%s1 + $0x1b8] sm:$0xff]
  %v93 = vld [vmem:[%s1 + $0x1c0] sm:$0xff]
  %v94 = vld [vmem:[%s1 + $0x1c8] sm:$0xff]
  %v95 = vld [vmem:[%s1 + $0x1d0] sm:$0xff]
  %v96 = vld [vmem:[%s1 + $0x1d8] sm:$0xff]
  %v97 = vld [vmem:[%s1 + $0x1e0] sm:$0xff]
  %v98 = vld [vmem:[%s1 + $0x1e8] sm:$0xff]
  %v99 = vld [vmem:[%s1 + $0x1f0] sm:$0xff]
  %v100 = vld [vmem:[%s1 + $0x1f8] sm:$0xff]
  %v101 = vld [vmem:[%s1 + $0x200] sm:$0xff]
  %v102 = vld [vmem:[%s1 + $0x208] sm:$0xff]
  %v103 = vld [vmem:[%s1 + $0x210] sm:$0xff]
  %v104 = vld [vmem:[%s1 + $0x218] sm:$0xff]
  %v105 = vld [vmem:[%s1 + $0x220] sm:$0xff]
  %v106 = vld [vmem:[%s1 + $0x228] sm:$0xff]
  %v107 = vld [vmem:[%s1 + $0x230] sm:$0xff]
  %v108 = vld [vmem:[%s1 + $0x238] sm:$0xff]
  %v109 = vld [vmem:[%s1 + $0x240] sm:$0xff]
  %v110 = vld [vmem:[%s1 + $0x248] sm:$0xff]
  %v111 = vld [vmem:[%s1 + $0x250] sm:$0xff]
  %v112 = vld [vmem:[%s1 + $0x258] sm:$0xff]
  %v113 = vld [vmem:[%s1 + $0x260] sm:$0xff]
  %v114 = vld [vmem:[%s1 + $0x268] sm:$0xff]
  %v115 = vld [vmem:[%s1 + $0x270] sm:$0xff]
  %v116 = vld [vmem:[%s1 + $0x278] sm:$0xff]
  %v117 = vld [vmem:[%s1 + $0x280] sm:$0xff]
  %v118 = vld [vmem:[%s1 + $0x288] sm:$0xff]
  %v119 = vld [vmem:[%s1 + $0x290] sm:$0xff]
  %v120 = vld [vmem:[%s1 + $0x298] sm:$0xff]
  %v121 = vld [vmem:[%s1 + $0x2a0] sm:$0xff]
  %v122 = vld [vmem:[%s1 + $0x2a8] sm:$0xff]
  %v123 = vld [vmem:[%s1 + $0x2b0] sm:$0xff]
  %v124 = vld [vmem:[%s1 + $0x2b8] sm:$0xff]
  %v125 = vld [vmem:[%s1 + $0x2c0] sm:$0xff]
  %v126 = vld [vmem:[%s1 + $0x2c8] sm:$0xff]
  %v127 = vld [vmem:[%s1 + $0x2d0] sm:$0xff]
  %v128 = vld [vmem:[%s1 + $0x2d8] sm:$0xff]
  %v129 = vld [vmem:[%s1 + $0x2e0] sm:$0xff]
  %v130 = vld [vmem:[%s1 + $0x2e8] sm:$0xff]
  %v131 = vld [vmem:[%s1 + $0x2f0] sm:$0xff]
  %v132 = vld [vmem:[%s1 + $0x2f8] sm:$0xff]
  %v133 = vld [vmem:[%s1 + $0x300] sm:$0xff]
  %v134 = vld [vmem:[%s1 + $0x308] sm:$0xff]
  %v135 = vld [vmem:[%s1 + $0x310] sm:$0xff]
  %v136 = vld [vmem:[%s1 + $0x318] sm:$0xff]
  %v137 = vld [vmem:[%s1 + $0x320] sm:$0xff]
  %v138 = vld [vmem:[%s1 + $0x328] sm:$0xff]
  %v139 = vld [vmem:[%s1 + $0x330] sm:$0xff]
  %v140 = vld [vmem:[%s1 + $0x338] sm:$0xff]
  %v141 = vld [vmem:[%s1 + $0x340] sm:$0xff]
  %v142 = vld [vmem:[%s1 + $0x348] sm:$0xff]
  %v143 = vld [vmem:[%s1 + $0x350] sm:$0xff]
  %v144 = vld [vmem:[%s1 + $0x358] sm:$0xff]
  %v145 = vld [vmem:[%s1 + $0x360] sm:$0xff]
  %v146 = vld [vmem:[%s1 + $0x368] sm:$0xff]
  %v147 = vld [vmem:[%s1 + $0x370] sm:$0xff]
  %v148 = vld [vmem:[%s1 + $0x378] sm:$0xff]
  %v149 = vld [vmem:[%s1 + $0x380] sm:$0xff]
  %v150 = vld [vmem:[%s1 + $0x388] sm:$0xff]
  %v151 = vld [vmem:[%s1 + $0x390] sm:$0xff]
  %v152 = vld [vmem:[%s1 + $0x398] sm:$0xff]
  %v153 = vld [vmem:[%s1 + $0x3a0] sm:$0xff]
  %v154 = vld [vmem:[%s1 + $0x3a8] sm:$0xff]
  %v155 = vld [vmem:[%s1 + $0x3b0] sm:$0xff]
  %v156 = vld [vmem:[%s1 + $0x3b8] sm:$0xff]
  %v157 = vld [vmem:[%s1 + $0x3c0] sm:$0xff]
  %v158 = vld [vmem:[%s1 + $0x3c8] sm:$0xff]
  %v159 = vld [vmem:[%s1 + $0x3d0] sm:$0xff]
  %v160 = vld [vmem:[%s1 + $0x3d8] sm:$0xff]
  %v161 = vld [vmem:[%s1 + $0x3e0] sm:$0xff]
  %v162 = vld [vmem:[%s1 + $0x3e8] sm:$0xff]
  %v163 = vld [vmem:[%s1 + $0x3f0] sm:$0xff]
  %v164 = vld [vmem:[%s1 + $0x3f8] sm:$0xff]
  %v165 = vld [vmem:[%s1 + $0x400] sm:$0xff]
  %v166 = vld [vmem:[%s1 + $0x408] sm:$0xff]
  %v167 = vld [vmem:[%s1 + $0x410] sm:$0xff]
  %v168 = vld [vmem:[%s1 + $0x418] sm:$0xff]
  %v169 = vld [vmem:[%s1 + $0x420] sm:$0xff]
  %v170 = vld [vmem:[%s1 + $0x428] sm:$0xff]
  %v171 = vld [vmem:[%s1 + $0x430] sm:$0xff]
  %v172 = vld [vmem:[%s1 + $0x438] sm:$0xff]
  %v173 = vld [vmem:[%s1 + $0x440] sm:$0xff]
  %v174 = vld [vmem:[%s1 + $0x448] sm:$0xff]
  %v175 = vld [vmem:[%s1 + $0x450] sm:$0xff]
  %v176 = vld [vmem:[%s1 + $0x458] sm:$0xff]
  %v177 = vld [vmem:[%s1 + $0x460] sm:$0xff]
  %v178 = vld [vmem:[%s1 + $0x468] sm:$0xff]
  %v179 = vld [vmem:[%s1 + $0x470] sm:$0xff]
  %v180 = vld [vmem:[%s1 + $0x478] sm:$0xff]
  %v181 = vld [vmem:[%s1 + $0x480] sm:$0xff]
  %v182 = vld [vmem:[%s1 + $0x488] sm:$0xff]
  %v183 = vld [vmem:[%s1 + $0x490] sm:$0xff]
  %v184 = vld [vmem:[%s1 + $0x498] sm:$0xff]
  %v185 = vld [vmem:[%s1 + $0x4a0] sm:$0xff]
  %v186 = vld [vmem:[%s1 + $0x4a8] sm:$0xff]
  %v187 = vld [vmem:[%s1 + $0x4b0] sm:$0xff]
  %v188 = vld [vmem:[%s1 + $0x4b8] sm:$0xff]
  %v189 = vld [vmem:[%s1 + $0x4c0] sm:$0xff]
  %v190 = vld [vmem:[%s1 + $0x4c8] sm:$0xff]
  %v191 = vld [vmem:[%s1 + $0x4d0] sm:$0xff]
  %v192 = vld [vmem:[%s1 + $0x4d8] sm:$0xff]
  %v193 = vld [vmem:[%s1 + $0x4e0] sm:$0xff]
  %v194 = vld [vmem:[%s1 + $0x4e8] sm:$0xff]
  %v195 = vld [vmem:[%s1 + $0x4f0] sm:$0xff]
  %v196 = vld [vmem:[%s1 + $0x4f8] sm:$0xff]
  %v197 = vld [vmem:[%s1 + $0x500] sm:$0xff]
  %v198 = vld [vmem:[%s1 + $0x508] sm:$0xff]
  %v199 = vld [vmem:[%s1 + $0x510] sm:$0xff]
  %v200 = vld [vmem:[%s1 + $0x518] sm:$0xff]
  %v201 = vld [vmem:[%s1 + $0x520] sm:$0xff]
  %v202 = vld [vmem:[%s1 + $0x528] sm:$0xff]
  %v203 = vld [vmem:[%s1 + $0x530] sm:$0xff]
  %v204 = vld [vmem:[%s1 + $0x538] sm:$0xff]
  %v205 = vld [vmem:[%s1 + $0x540] sm:$0xff]
  %v206 = vld [vmem:[%s1 + $0x548] sm:$0xff]
  %v207 = vld [vmem:[%s1 + $0x550] sm:$0xff]
  %v208 = vld [vmem:[%s1 + $0x558] sm:$0xff]
  %v209 = vld [vmem:[%s1 + $0x560] sm:$0xff]
  %v210 = vld [vmem:[%s1 + $0x568] sm:$0xff]
  %v211 = vld [vmem:[%s1 + $0x570] sm:$0xff]
  %v212 = vld [vmem:[%s1 + $0x578] sm:$0xff]
  %v213 = vld [vmem:[%s1 + $0x580] sm:$0xff]
  %v214 = vld [vmem:[%s1 + $0x588] sm:$0xff]
  %v215 = vld [vmem:[%s1 + $0x590] sm:$0xff]
  %v216 = vld [vmem:[%s1 + $0x598] sm:$0xff]
  %v217 = vld [vmem:[%s1 + $0x5a0] sm:$0xff]
  %v218 = vld [vmem:[%s1 + $0x5a8] sm:$0xff]
  %v219 = vld [vmem:[%s1 + $0x5b0] sm:$0xff]
  %v220 = vld [vmem:[%s1 + $0x5b8] sm:$0xff]
  %v221 = vld [vmem:[%s1 + $0x5c0] sm:$0xff]
  %v222 = vld [vmem:[%s1 + $0x5c8] sm:$0xff]
  %v223 = vld [vmem:[%s1 + $0x5d0] sm:$0xff]
  %v224 = vld [vmem:[%s1 + $0x5d8] sm:$0xff]
  %v225 = vld [vmem:[%s1 + $0x5e0] sm:$0xff]
  %v226 = vld [vmem:[%s1 + $0x5e8] sm:$0xff]
  %v227 = vld [vmem:[%s1 + $0x5f0] sm:$0xff]
  %v228 = vld [vmem:[%s1 + $0x5f8] sm:$0xff]
  %v229 = vld [vmem:[%s1 + $0x600] sm:$0xff]
  %v230 = vld [vmem:[%s1 + $0x608] sm:$0xff]
  %v231 = vld [vmem:[%s1 + $0x610] sm:$0xff]
  %v232 = vld [vmem:[%s1 + $0x618] sm:$0xff]
  %v233 = vld [vmem:[%s1 + $0x620] sm:$0xff]
  %v234 = vld [vmem:[%s1 + $0x628] sm:$0xff]
  %v235 = vld [vmem:[%s1 + $0x630] sm:$0xff]
  %v236 = vld [vmem:[%s1 + $0x638] sm:$0xff]
  %v237 = vld [vmem:[%s1 + $0x640] sm:$0xff]
  %v238 = vld [vmem:[%s1 + $0x648] sm:$0xff]
  %v239 = vld [vmem:[%s1 + $0x650] sm:$0xff]
  %v240 = vld [vmem:[%s1 + $0x658] sm:$0xff]
  %v241 = vld [vmem:[%s1 + $0x660] sm:$0xff]
  %v242 = vld [vmem:[%s1 + $0x668] sm:$0xff]
  %v243 = vld [vmem:[%s1 + $0x670] sm:$0xff]
  %v244 = vld [vmem:[%s1 + $0x678] sm:$0xff]
  %v245 = vld [vmem:[%s1 + $0x680] sm:$0xff]
  %v246 = vld [vmem:[%s1 + $0x688] sm:$0xff]
  %v247 = vld [vmem:[%s1 + $0x690] sm:$0xff]
  %v248 = vld [vmem:[%s1 + $0x698] sm:$0xff]
  %v249 = vld [vmem:[%s1 + $0x6a0] sm:$0xff]
  %v250 = vld [vmem:[%s1 + $0x6a8] sm:$0xff]
  %v251 = vld [vmem:[%s1 + $0x6b0] sm:$0xff]
  %v252 = vld [vmem:[%s1 + $0x6b8] sm:$0xff]
  %v253 = vld [vmem:[%s1 + $0x6c0] sm:$0xff]
  %v254 = vld [vmem:[%s1 + $0x6c8] sm:$0xff]
  %v255 = vld [vmem:[%s1 + $0x6d0] sm:$0xff]
  %v256 = vld [vmem:[%s1 + $0x6d8] sm:$0xff]
  %v257 = vld [vmem:[%s1 + $0x6e0] sm:$0xff]
  %v258 = vld [vmem:[%s1 + $0x6e8] sm:$0xff]
  %v259 = vld [vmem:[%s1 + $0x6f0] sm:$0xff]
  %v260 = vld [vmem:[%s1 + $0x6f8] sm:$0xff]
  %v261 = vld [vmem:[%s1 + $0x700] sm:$0xff]
  %v262 = vld [vmem:[%s1 + $0x708] sm:$0xff]
  %v263 = vld [vmem:[%s1 + $0x710] sm:$0xff]
  %v264 = vld [vmem:[%s1 + $0x718] sm:$0xff]
  %v265 = vld [vmem:[%s1 + $0x720] sm:$0xff]
  %v266 = vld [vmem:[%s1 + $0x728] sm:$0xff]
  %v267 = vld [vmem:[%s1 + $0x730] sm:$0xff]
  %v268 = vld [vmem:[%s1 + $0x738] sm:$0xff]
  %v269 = vld [vmem:[%s1 + $0x740] sm:$0xff]
  %v270 = vld [vmem:[%s1 + $0x748] sm:$0xff]
  %v271 = vld [vmem:[%s1 + $0x750] sm:$0xff]
  %v272 = vld [vmem:[%s1 + $0x758] sm:$0xff]
  %v273 = vld [vmem:[%s1 + $0x760] sm:$0xff]
  %v274 = vld [vmem:[%s1 + $0x768] sm:$0xff]
  %v275 = vld [vmem:[%s1 + $0x770] sm:$0xff]
  %v276 = vld [vmem:[%s1 + $0x778] sm:$0xff]
  %v277 = vld [vmem:[%s1 + $0x780] sm:$0xff]
  %v278 = vld [vmem:[%s1 + $0x788] sm:$0xff]
  %v279 = vld [vmem:[%s1 + $0x790] sm:$0xff]
  %v280 = vld [vmem:[%s1 + $0x798] sm:$0xff]
  %v281 = vld [vmem:[%s1 + $0x7a0] sm:$0xff]
  %v282 = vld [vmem:[%s1 + $0x7a8] sm:$0xff]
  %v283 = vld [vmem:[%s1 + $0x7b0] sm:$0xff]
  %v284 = vld [vmem:[%s1 + $0x7b8] sm:$0xff]
  %v285 = vld [vmem:[%s1 + $0x7c0] sm:$0xff]
  %v286 = vld [vmem:[%s1 + $0x7c8] sm:$0xff]
  %v287 = vld [vmem:[%s1 + $0x7d0] sm:$0xff]
  %v288 = vld [vmem:[%s1 + $0x7d8] sm:$0xff]
  %v289 = vld [vmem:[%s1 + $0x7e0] sm:$0xff]
  %v290 = vld [vmem:[%s1 + $0x7e8] sm:$0xff]
  %v291 = vld [vmem:[%s1 + $0x7f0] sm:$0xff]
  %v292 = vld [vmem:[%s1 + $0x7f8] sm:$0xff]
  %v293 = vld [vmem:[%s1 + $0x800] sm:$0xff]
  %v294 = vld [vmem:[%s1 + $0x808] sm:$0xff]
  %v295 = vld [vmem:[%s1 + $0x810] sm:$0xff]
  %v296 = vld [vmem:[%s1 + $0x818] sm:$0xff]
  %v297 = vld [vmem:[%s1 + $0x820] sm:$0xff]
  %v298 = vld [vmem:[%s1 + $0x828] sm:$0xff]
  %v299 = vld [vmem:[%s1 + $0x830] sm:$0xff]
  %v300 = vld [vmem:[%s1 + $0x838] sm:$0xff]
  %v301 = vld [vmem:[%s1 + $0x840] sm:$0xff]
  %v302 = vld [vmem:[%s1 + $0x848] sm:$0xff]
  %v303 = vld [vmem:[%s1 + $0x850] sm:$0xff]
  %v304 = vld [vmem:[%s1 + $0x858] sm:$0xff]
  %v305 = vld [vmem:[%s1 + $0x860] sm:$0xff]
  %v306 = vld [vmem:[%s1 + $0x868] sm:$0xff]
  %v307 = vld [vmem:[%s1 + $0x870] sm:$0xff]
  %v308 = vld [vmem:[%s1 + $0x878] sm:$0xff]
  %v309 = vld [vmem:[%s1 + $0x880] sm:$0xff]
  %v310 = vld [vmem:[%s1 + $0x888] sm:$0xff]
  %v311 = vld [vmem:[%s1 + $0x890] sm:$0xff]
  %v312 = vld [vmem:[%s1 + $0x898] sm:$0xff]
  %v313 = vld [vmem:[%s1 + $0x8a0] sm:$0xff]
  %v314 = vld [vmem:[%s1 + $0x8a8] sm:$0xff]
  %v315 = vld [vmem:[%s1 + $0x8b0] sm:$0xff]
  %v316 = vld [vmem:[%s1 + $0x8b8] sm:$0xff]
  %v317 = vld [vmem:[%s1 + $0x8c0] sm:$0xff]
  %v318 = vld [vmem:[%s1 + $0x8c8] sm:$0xff]
  %v319 = vld [vmem:[%s1 + $0x8d0] sm:$0xff]
  %v320 = vld [vmem:[%s1 + $0x8d8] sm:$0xff]
  %v321 = vld [vmem:[%s1 + $0x8e0] sm:$0xff]
  %v322 = vld [vmem:[%s1 + $0x8e8] sm:$0xff]
  %v323 = vld [vmem:[%s1 + $0x8f0] sm:$0xff]
  %v324 = vld [vmem:[%s1 + $0x8f8] sm:$0xff]
  %v325 = vld [vmem:[%s2] sm:$0xf]
  %v327 = vperm.slane %v325, 0
  %v328 = vperm.slane %v325, 1
  %v329 = vperm.slane %v325, 2
  %v330 = vperm.slane %v325, 3
  %vm335 = vcmask 523264
  %v337 = vsel %vm335, %v36, 0
  %339 = vmatpush.msra.mxu0 %v97
  %340 = vmatpush.msra.mxu0 %v93
  %341 = vmatpush.msra.mxu0 %v89
  %342 = vmatpush.msra.mxu0 %v85
  %343 = vmatpush.msra.mxu0 %v81
  %344 = vmatpush.msra.mxu0 %v77
  %345 = vmatpush.msra.mxu0 %v73
  %346 = vmatpush.msra.mxu0 %v69
  %347 = vmatpush.msra.mxu0 %v65
  %348 = vmatpush.msra.mxu0 %v61
  %349 = vmatpush.msra.mxu0 %v57
  %350 = vmatpush.msra.mxu0 %v53
  %351 = vmatpush.msra.mxu0 %v49
  %352 = vmatpush.msra.mxu0 %v45
  %353 = vmatpush.msra.mxu0 %v41
  %354 = vmatpush.msra.mxu0 %v37
  %355 = vmatmul.f32.gmra.mxu0 %v32
  %v356 = vpop.f32.mrf.mxu0
  %v357 = vadd.f32 %v327, %v356
  %358 = vdwg.mxu0
  %359 = vmatpush.msra.mxu0 %v161
  %360 = vmatpush.msra.mxu0 %v157
  %361 = vmatpush.msra.mxu0 %v153
  %362 = vmatpush.msra.mxu0 %v149
  %363 = vmatpush.msra.mxu0 %v145
  %364 = vmatpush.msra.mxu0 %v141
  %365 = vmatpush.msra.mxu0 %v137
  %366 = vmatpush.msra.mxu0 %v133
  %367 = vmatpush.msra.mxu0 %v129
  %368 = vmatpush.msra.mxu0 %v125
  %369 = vmatpush.msra.mxu0 %v121
  %370 = vmatpush.msra.mxu0 %v117
  %371 = vmatpush.msra.mxu0 %v113
  %372 = vmatpush.msra.mxu0 %v109
  %373 = vmatpush.msra.mxu0 %v105
  %374 = vmatpush.msra.mxu0 %v101
  %375 = vmatmul.f32.gmra.mxu0 %v33
  %v376 = vpop.f32.mrf.mxu0
  %v377 = vadd.f32 %v357, %v376
  %378 = vdwg.mxu0
  %379 = vmatpush.msra.mxu0 %v225
  %380 = vmatpush.msra.mxu0 %v221
  %381 = vmatpush.msra.mxu0 %v217
  %382 = vmatpush.msra.mxu0 %v213
  %383 = vmatpush.msra.mxu0 %v209
  %384 = vmatpush.msra.mxu0 %v205
  %385 = vmatpush.msra.mxu0 %v201
  %386 = vmatpush.msra.mxu0 %v197
  %387 = vmatpush.msra.mxu0 %v193
  %388 = vmatpush.msra.mxu0 %v189
  %389 = vmatpush.msra.mxu0 %v185
  %390 = vmatpush.msra.mxu0 %v181
  %391 = vmatpush.msra.mxu0 %v177
  %392 = vmatpush.msra.mxu0 %v173
  %393 = vmatpush.msra.mxu0 %v169
  %394 = vmatpush.msra.mxu0 %v165
  %395 = vmatmul.f32.gmra.mxu0 %v34
  %v396 = vpop.f32.mrf.mxu0
  %v397 = vadd.f32 %v377, %v396
  %398 = vdwg.mxu0
  %399 = vmatpush.msra.mxu0 %v289
  %400 = vmatpush.msra.mxu0 %v285
  %401 = vmatpush.msra.mxu0 %v281
  %402 = vmatpush.msra.mxu0 %v277
  %403 = vmatpush.msra.mxu0 %v273
  %404 = vmatpush.msra.mxu0 %v269
  %405 = vmatpush.msra.mxu0 %v265
  %406 = vmatpush.msra.mxu0 %v261
  %407 = vmatpush.msra.mxu0 %v257
  %408 = vmatpush.msra.mxu0 %v253
  %409 = vmatpush.msra.mxu0 %v249
  %410 = vmatpush.msra.mxu0 %v245
  %411 = vmatpush.msra.mxu0 %v241
  %412 = vmatpush.msra.mxu0 %v237
  %413 = vmatpush.msra.mxu0 %v233
  %414 = vmatpush.msra.mxu0 %v229
  %415 = vmatmul.f32.gmra.mxu0 %v35
  %v416 = vpop.f32.mrf.mxu0
  %v417 = vadd.f32 %v397, %v416
  %418 = vdwg.mxu0
  %419 = vmatpush.msra.mxu0 0.0
  %420 = vmatpush.msra.mxu0 0.0
  %421 = vmatpush.msra.mxu0 0.0
  %422 = vmatpush.msra.mxu0 0.0
  %423 = vmatpush.msra.mxu0 0.0
  %424 = vmatpush.msra.mxu0 0.0
  %425 = vmatpush.msra.mxu0 0.0
  %426 = vmatpush.msra.mxu0 0.0
  %427 = vmatpush.msra.mxu0 %v321
  %428 = vmatpush.msra.mxu0 %v317
  %429 = vmatpush.msra.mxu0 %v313
  %430 = vmatpush.msra.mxu0 %v309
  %431 = vmatpush.msra.mxu0 %v305
  %432 = vmatpush.msra.mxu0 %v301
  %433 = vmatpush.msra.mxu0 %v297
  %434 = vmatpush.msra.mxu0 %v293
  %435 = vmatmul.f32.gmra.mxu0 %v337
  %v436 = vpop.f32.mrf.mxu0
  %v437 = vadd.f32 %v417, %v436
  %438 = vdwg.mxu0
  %439 = vmatpush.msra.mxu0 %v98
  %440 = vmatpush.msra.mxu0 %v94
  %441 = vmatpush.msra.mxu0 %v90
  %442 = vmatpush.msra.mxu0 %v86
  %443 = vmatpush.msra.mxu0 %v82
  %444 = vmatpush.msra.mxu0 %v78
  %445 = vmatpush.msra.mxu0 %v74
  %446 = vmatpush.msra.mxu0 %v70
  %447 = vmatpush.msra.mxu0 %v66
  %448 = vmatpush.msra.mxu0 %v62
  %449 = vmatpush.msra.mxu0 %v58
  %450 = vmatpush.msra.mxu0 %v54
  %451 = vmatpush.msra.mxu0 %v50
  %452 = vmatpush.msra.mxu0 %v46
  %453 = vmatpush.msra.mxu0 %v42
  %454 = vmatpush.msra.mxu0 %v38
  %455 = vmatmul.f32.gmra.mxu0 %v32
  %v456 = vpop.f32.mrf.mxu0
  %v457 = vadd.f32 %v328, %v456
  %458 = vdwg.mxu0
  %459 = vmatpush.msra.mxu0 %v162
  %460 = vmatpush.msra.mxu0 %v158
  %461 = vmatpush.msra.mxu0 %v154
  %462 = vmatpush.msra.mxu0 %v150
  %463 = vmatpush.msra.mxu0 %v146
  %464 = vmatpush.msra.mxu0 %v142
  %465 = vmatpush.msra.mxu0 %v138
  %466 = vmatpush.msra.mxu0 %v134
  %467 = vmatpush.msra.mxu0 %v130
  %468 = vmatpush.msra.mxu0 %v126
  %469 = vmatpush.msra.mxu0 %v122
  %470 = vmatpush.msra.mxu0 %v118
  %471 = vmatpush.msra.mxu0 %v114
  %472 = vmatpush.msra.mxu0 %v110
  %473 = vmatpush.msra.mxu0 %v106
  %474 = vmatpush.msra.mxu0 %v102
  %475 = vmatmul.f32.gmra.mxu0 %v33
  %v476 = vpop.f32.mrf.mxu0
  %v477 = vadd.f32 %v457, %v476
  %478 = vdwg.mxu0
  %479 = vmatpush.msra.mxu0 %v226
  %480 = vmatpush.msra.mxu0 %v222
  %481 = vmatpush.msra.mxu0 %v218
  %482 = vmatpush.msra.mxu0 %v214
  %483 = vmatpush.msra.mxu0 %v210
  %484 = vmatpush.msra.mxu0 %v206
  %485 = vmatpush.msra.mxu0 %v202
  %486 = vmatpush.msra.mxu0 %v198
  %487 = vmatpush.msra.mxu0 %v194
  %488 = vmatpush.msra.mxu0 %v190
  %489 = vmatpush.msra.mxu0 %v186
  %490 = vmatpush.msra.mxu0 %v182
  %491 = vmatpush.msra.mxu0 %v178
  %492 = vmatpush.msra.mxu0 %v174
  %493 = vmatpush.msra.mxu0 %v170
  %494 = vmatpush.msra.mxu0 %v166
  %495 = vmatmul.f32.gmra.mxu0 %v34
  %v496 = vpop.f32.mrf.mxu0
  %v497 = vadd.f32 %v477, %v496
  %498 = vdwg.mxu0
  %499 = vmatpush.msra.mxu0 %v290
  %500 = vmatpush.msra.mxu0 %v286
  %501 = vmatpush.msra.mxu0 %v282
  %502 = vmatpush.msra.mxu0 %v278
  %503 = vmatpush.msra.mxu0 %v274
  %504 = vmatpush.msra.mxu0 %v270
  %505 = vmatpush.msra.mxu0 %v266
  %506 = vmatpush.msra.mxu0 %v262
  %507 = vmatpush.msra.mxu0 %v258
  %508 = vmatpush.msra.mxu0 %v254
  %509 = vmatpush.msra.mxu0 %v250
  %510 = vmatpush.msra.mxu0 %v246
  %511 = vmatpush.msra.mxu0 %v242
  %512 = vmatpush.msra.mxu0 %v238
  %513 = vmatpush.msra.mxu0 %v234
  %514 = vmatpush.msra.mxu0 %v230
  %515 = vmatmul.f32.gmra.mxu0 %v35
  %v516 = vpop.f32.mrf.mxu0
  %v517 = vadd.f32 %v497, %v516
  %518 = vdwg.mxu0
  %519 = vmatpush.msra.mxu0 0.0
  %520 = vmatpush.msra.mxu0 0.0
  %521 = vmatpush.msra.mxu0 0.0
  %522 = vmatpush.msra.mxu0 0.0
  %523 = vmatpush.msra.mxu0 0.0
  %524 = vmatpush.msra.mxu0 0.0
  %525 = vmatpush.msra.mxu0 0.0
  %526 = vmatpush.msra.mxu0 0.0
  %527 = vmatpush.msra.mxu0 %v322
  %528 = vmatpush.msra.mxu0 %v318
  %529 = vmatpush.msra.mxu0 %v314
  %530 = vmatpush.msra.mxu0 %v310
  %531 = vmatpush.msra.mxu0 %v306
  %532 = vmatpush.msra.mxu0 %v302
  %533 = vmatpush.msra.mxu0 %v298
  %534 = vmatpush.msra.mxu0 %v294
  %535 = vmatmul.f32.gmra.mxu0 %v337
  %v536 = vpop.f32.mrf.mxu0
  %v537 = vadd.f32 %v517, %v536
  %538 = vdwg.mxu0
  %539 = vmatpush.msra.mxu0 %v99
  %540 = vmatpush.msra.mxu0 %v95
  %541 = vmatpush.msra.mxu0 %v91
  %542 = vmatpush.msra.mxu0 %v87
  %543 = vmatpush.msra.mxu0 %v83
  %544 = vmatpush.msra.mxu0 %v79
  %545 = vmatpush.msra.mxu0 %v75
  %546 = vmatpush.msra.mxu0 %v71
  %547 = vmatpush.msra.mxu0 %v67
  %548 = vmatpush.msra.mxu0 %v63
  %549 = vmatpush.msra.mxu0 %v59
  %550 = vmatpush.msra.mxu0 %v55
  %551 = vmatpush.msra.mxu0 %v51
  %552 = vmatpush.msra.mxu0 %v47
  %553 = vmatpush.msra.mxu0 %v43
  %554 = vmatpush.msra.mxu0 %v39
  %555 = vmatmul.f32.gmra.mxu0 %v32
  %v556 = vpop.f32.mrf.mxu0
  %v557 = vadd.f32 %v329, %v556
  %558 = vdwg.mxu0
  %559 = vmatpush.msra.mxu0 %v163
  %560 = vmatpush.msra.mxu0 %v159
  %561 = vmatpush.msra.mxu0 %v155
  %562 = vmatpush.msra.mxu0 %v151
  %563 = vmatpush.msra.mxu0 %v147
  %564 = vmatpush.msra.mxu0 %v143
  %565 = vmatpush.msra.mxu0 %v139
  %566 = vmatpush.msra.mxu0 %v135
  %567 = vmatpush.msra.mxu0 %v131
  %568 = vmatpush.msra.mxu0 %v127
  %569 = vmatpush.msra.mxu0 %v123
  %570 = vmatpush.msra.mxu0 %v119
  %571 = vmatpush.msra.mxu0 %v115
  %572 = vmatpush.msra.mxu0 %v111
  %573 = vmatpush.msra.mxu0 %v107
  %574 = vmatpush.msra.mxu0 %v103
  %575 = vmatmul.f32.gmra.mxu0 %v33
  %v576 = vpop.f32.mrf.mxu0
  %v577 = vadd.f32 %v557, %v576
  %578 = vdwg.mxu0
  %579 = vmatpush.msra.mxu0 %v227
  %580 = vmatpush.msra.mxu0 %v223
  %581 = vmatpush.msra.mxu0 %v219
  %582 = vmatpush.msra.mxu0 %v215
  %583 = vmatpush.msra.mxu0 %v211
  %584 = vmatpush.msra.mxu0 %v207
  %585 = vmatpush.msra.mxu0 %v203
  %586 = vmatpush.msra.mxu0 %v199
  %587 = vmatpush.msra.mxu0 %v195
  %588 = vmatpush.msra.mxu0 %v191
  %589 = vmatpush.msra.mxu0 %v187
  %590 = vmatpush.msra.mxu0 %v183
  %591 = vmatpush.msra.mxu0 %v179
  %592 = vmatpush.msra.mxu0 %v175
  %593 = vmatpush.msra.mxu0 %v171
  %594 = vmatpush.msra.mxu0 %v167
  %595 = vmatmul.f32.gmra.mxu0 %v34
  %v596 = vpop.f32.mrf.mxu0
  %v597 = vadd.f32 %v577, %v596
  %598 = vdwg.mxu0
  %599 = vmatpush.msra.mxu0 %v291
  %600 = vmatpush.msra.mxu0 %v287
  %601 = vmatpush.msra.mxu0 %v283
  %602 = vmatpush.msra.mxu0 %v279
  %603 = vmatpush.msra.mxu0 %v275
  %604 = vmatpush.msra.mxu0 %v271
  %605 = vmatpush.msra.mxu0 %v267
  %606 = vmatpush.msra.mxu0 %v263
  %607 = vmatpush.msra.mxu0 %v259
  %608 = vmatpush.msra.mxu0 %v255
  %609 = vmatpush.msra.mxu0 %v251
  %610 = vmatpush.msra.mxu0 %v247
  %611 = vmatpush.msra.mxu0 %v243
  %612 = vmatpush.msra.mxu0 %v239
  %613 = vmatpush.msra.mxu0 %v235
  %614 = vmatpush.msra.mxu0 %v231
  %615 = vmatmul.f32.gmra.mxu0 %v35
  %v616 = vpop.f32.mrf.mxu0
  %v617 = vadd.f32 %v597, %v616
  %618 = vdwg.mxu0
  %619 = vmatpush.msra.mxu0 0.0
  %620 = vmatpush.msra.mxu0 0.0
  %621 = vmatpush.msra.mxu0 0.0
  %622 = vmatpush.msra.mxu0 0.0
  %623 = vmatpush.msra.mxu0 0.0
  %624 = vmatpush.msra.mxu0 0.0
  %625 = vmatpush.msra.mxu0 0.0
  %626 = vmatpush.msra.mxu0 0.0
  %627 = vmatpush.msra.mxu0 %v323
  %628 = vmatpush.msra.mxu0 %v319
  %629 = vmatpush.msra.mxu0 %v315
  %630 = vmatpush.msra.mxu0 %v311
  %631 = vmatpush.msra.mxu0 %v307
  %632 = vmatpush.msra.mxu0 %v303
  %633 = vmatpush.msra.mxu0 %v299
  %634 = vmatpush.msra.mxu0 %v295
  %635 = vmatmul.f32.gmra.mxu0 %v337
  %v636 = vpop.f32.mrf.mxu0
  %v637 = vadd.f32 %v617, %v636
  %638 = vdwg.mxu0
  %639 = vmatpush.msra.mxu0 %v100
  %640 = vmatpush.msra.mxu0 %v96
  %641 = vmatpush.msra.mxu0 %v92
  %642 = vmatpush.msra.mxu0 %v88
  %643 = vmatpush.msra.mxu0 %v84
  %644 = vmatpush.msra.mxu0 %v80
  %645 = vmatpush.msra.mxu0 %v76
  %646 = vmatpush.msra.mxu0 %v72
  %647 = vmatpush.msra.mxu0 %v68
  %648 = vmatpush.msra.mxu0 %v64
  %649 = vmatpush.msra.mxu0 %v60
  %650 = vmatpush.msra.mxu0 %v56
  %651 = vmatpush.msra.mxu0 %v52
  %652 = vmatpush.msra.mxu0 %v48
  %653 = vmatpush.msra.mxu0 %v44
  %654 = vmatpush.msra.mxu0 %v40
  %655 = vmatmul.f32.gmra.mxu0 %v32
  %v656 = vpop.f32.mrf.mxu0
  %v657 = vadd.f32 %v330, %v656
  %658 = vdwg.mxu0
  %659 = vmatpush.msra.mxu0 %v164
  %660 = vmatpush.msra.mxu0 %v160
  %661 = vmatpush.msra.mxu0 %v156
  %662 = vmatpush.msra.mxu0 %v152
  %663 = vmatpush.msra.mxu0 %v148
  %664 = vmatpush.msra.mxu0 %v144
  %665 = vmatpush.msra.mxu0 %v140
  %666 = vmatpush.msra.mxu0 %v136
  %667 = vmatpush.msra.mxu0 %v132
  %668 = vmatpush.msra.mxu0 %v128
  %669 = vmatpush.msra.mxu0 %v124
  %670 = vmatpush.msra.mxu0 %v120
  %671 = vmatpush.msra.mxu0 %v116
  %672 = vmatpush.msra.mxu0 %v112
  %673 = vmatpush.msra.mxu0 %v108
  %674 = vmatpush.msra.mxu0 %v104
  %675 = vmatmul.f32.gmra.mxu0 %v33
  %v676 = vpop.f32.mrf.mxu0
  %v677 = vadd.f32 %v657, %v676
  %678 = vdwg.mxu0
  %679 = vmatpush.msra.mxu0 %v228
  %680 = vmatpush.msra.mxu0 %v224
  %681 = vmatpush.msra.mxu0 %v220
  %682 = vmatpush.msra.mxu0 %v216
  %683 = vmatpush.msra.mxu0 %v212
  %684 = vmatpush.msra.mxu0 %v208
  %685 = vmatpush.msra.mxu0 %v204
  %686 = vmatpush.msra.mxu0 %v200
  %687 = vmatpush.msra.mxu0 %v196
  %688 = vmatpush.msra.mxu0 %v192
  %689 = vmatpush.msra.mxu0 %v188
  %690 = vmatpush.msra.mxu0 %v184
  %691 = vmatpush.msra.mxu0 %v180
  %692 = vmatpush.msra.mxu0 %v176
  %693 = vmatpush.msra.mxu0 %v172
  %694 = vmatpush.msra.mxu0 %v168
  %695 = vmatmul.f32.gmra.mxu0 %v34
  %v696 = vpop.f32.mrf.mxu0
  %v697 = vadd.f32 %v677, %v696
  %698 = vdwg.mxu0
  %699 = vmatpush.msra.mxu0 %v292
  %700 = vmatpush.msra.mxu0 %v288
  %701 = vmatpush.msra.mxu0 %v284
  %702 = vmatpush.msra.mxu0 %v280
  %703 = vmatpush.msra.mxu0 %v276
  %704 = vmatpush.msra.mxu0 %v272
  %705 = vmatpush.msra.mxu0 %v268
  %706 = vmatpush.msra.mxu0 %v264
  %707 = vmatpush.msra.mxu0 %v260
  %708 = vmatpush.msra.mxu0 %v256
  %709 = vmatpush.msra.mxu0 %v252
  %710 = vmatpush.msra.mxu0 %v248
  %711 = vmatpush.msra.mxu0 %v244
  %712 = vmatpush.msra.mxu0 %v240
  %713 = vmatpush.msra.mxu0 %v236
  %714 = vmatpush.msra.mxu0 %v232
  %715 = vmatmul.f32.gmra.mxu0 %v35
  %v716 = vpop.f32.mrf.mxu0
  %v717 = vadd.f32 %v697, %v716
  %718 = vdwg.mxu0
  %719 = vmatpush.msra.mxu0 0.0
  %720 = vmatpush.msra.mxu0 0.0
  %721 = vmatpush.msra.mxu0 0.0
  %722 = vmatpush.msra.mxu0 0.0
  %723 = vmatpush.msra.mxu0 0.0
  %724 = vmatpush.msra.mxu0 0.0
  %725 = vmatpush.msra.mxu0 0.0
  %726 = vmatpush.msra.mxu0 0.0
  %727 = vmatpush.msra.mxu0 %v324
  %728 = vmatpush.msra.mxu0 %v320
  %729 = vmatpush.msra.mxu0 %v316
  %730 = vmatpush.msra.mxu0 %v312
  %731 = vmatpush.msra.mxu0 %v308
  %732 = vmatpush.msra.mxu0 %v304
  %733 = vmatpush.msra.mxu0 %v300
  %734 = vmatpush.msra.mxu0 %v296
  %735 = vmatmul.f32.gmra.mxu0 %v337
  %v736 = vpop.f32.mrf.mxu0
  %v737 = vadd.f32 %v717, %v736
  %738 = vdwg.mxu0
  %v739 = vmax.f32 %v437, 0.0
  %v740 = vmax.f32 %v537, 0.0
  %v741 = vmax.f32 %v637, 0.0
  %v742 = vmax.f32 %v737, 0.0
  %v743 = vld [vmem:[%s3] sm:$0xff]
  %v744 = vld [vmem:[%s3 + $0x8] sm:$0xff]
  %v745 = vld [vmem:[%s3 + $0x10] sm:$0xff]
  %v746 = vld [vmem:[%s3 + $0x18] sm:$0xff]
  %v747 = vld [vmem:[%s3 + $0x20] sm:$0xff]
  %v748 = vld [vmem:[%s3 + $0x28] sm:$0xff]
  %v749 = vld [vmem:[%s3 + $0x30] sm:$0xff]
  %v750 = vld [vmem:[%s3 + $0x38] sm:$0xff]
  %v751 = vld [vmem:[%s3 + $0x40] sm:$0xff]
  %v752 = vld [vmem:[%s3 + $0x48] sm:$0xff]
  %v753 = vld [vmem:[%s3 + $0x50] sm:$0xff]
  %v754 = vld [vmem:[%s3 + $0x58] sm:$0xff]
  %v755 = vld [vmem:[%s3 + $0x60] sm:$0xff]
  %v756 = vld [vmem:[%s3 + $0x68] sm:$0xff]
  %v757 = vld [vmem:[%s3 + $0x70] sm:$0xff]
  %v758 = vld [vmem:[%s3 + $0x78] sm:$0xff]
  %v759 = vld [vmem:[%s3 + $0x80] sm:$0xff]
  %v760 = vld [vmem:[%s3 + $0x88] sm:$0xff]
  %v761 = vld [vmem:[%s3 + $0x90] sm:$0xff]
  %v762 = vld [vmem:[%s3 + $0x98] sm:$0xff]
  %v763 = vld [vmem:[%s3 + $0xa0] sm:$0xff]
  %v764 = vld [vmem:[%s3 + $0xa8] sm:$0xff]
  %v765 = vld [vmem:[%s3 + $0xb0] sm:$0xff]
  %v766 = vld [vmem:[%s3 + $0xb8] sm:$0xff]
  %v767 = vld [vmem:[%s3 + $0xc0] sm:$0xff]
  %v768 = vld [vmem:[%s3 + $0xc8] sm:$0xff]
  %v769 = vld [vmem:[%s3 + $0xd0] sm:$0xff]
  %v770 = vld [vmem:[%s3 + $0xd8] sm:$0xff]
  %v771 = vld [vmem:[%s3 + $0xe0] sm:$0xff]
  %v772 = vld [vmem:[%s3 + $0xe8] sm:$0xff]
  %v773 = vld [vmem:[%s3 + $0xf0] sm:$0xff]
  %v774 = vld [vmem:[%s3 + $0xf8] sm:$0xff]
  %v775 = vld [vmem:[%s3 + $0x100] sm:$0xff]
  %v776 = vld [vmem:[%s3 + $0x108] sm:$0xff]
  %v777 = vld [vmem:[%s3 + $0x110] sm:$0xff]
  %v778 = vld [vmem:[%s3 + $0x118] sm:$0xff]
  %v779 = vld [vmem:[%s3 + $0x120] sm:$0xff]
  %v780 = vld [vmem:[%s3 + $0x128] sm:$0xff]
  %v781 = vld [vmem:[%s3 + $0x130] sm:$0xff]
  %v782 = vld [vmem:[%s3 + $0x138] sm:$0xff]
  %v783 = vld [vmem:[%s3 + $0x140] sm:$0xff]
  %v784 = vld [vmem:[%s3 + $0x148] sm:$0xff]
  %v785 = vld [vmem:[%s3 + $0x150] sm:$0xff]
  %v786 = vld [vmem:[%s3 + $0x158] sm:$0xff]
  %v787 = vld [vmem:[%s3 + $0x160] sm:$0xff]
  %v788 = vld [vmem:[%s3 + $0x168] sm:$0xff]
  %v789 = vld [vmem:[%s3 + $0x170] sm:$0xff]
  %v790 = vld [vmem:[%s3 + $0x178] sm:$0xff]
  %v791 = vld [vmem:[%s3 + $0x180] sm:$0xff]
  %v792 = vld [vmem:[%s3 + $0x188] sm:$0xff]
  %v793 = vld [vmem:[%s3 + $0x190] sm:$0xff]
  %v794 = vld [vmem:[%s3 + $0x198] sm:$0xff]
  %v795 = vld [vmem:[%s3 + $0x1a0] sm:$0xff]
  %v796 = vld [vmem:[%s3 + $0x1a8] sm:$0xff]
  %v797 = vld [vmem:[%s3 + $0x1b0] sm:$0xff]
  %v798 = vld [vmem:[%s3 + $0x1b8] sm:$0xff]
  %v799 = vld [vmem:[%s3 + $0x1c0] sm:$0xff]
  %v800 = vld [vmem:[%s3 + $0x1c8] sm:$0xff]
  %v801 = vld [vmem:[%s3 + $0x1d0] sm:$0xff]
  %v802 = vld [vmem:[%s3 + $0x1d8] sm:$0xff]
  %v803 = vld [vmem:[%s3 + $0x1e0] sm:$0xff]
  %v804 = vld [vmem:[%s3 + $0x1e8] sm:$0xff]
  %v805 = vld [vmem:[%s3 + $0x1f0] sm:$0xff]
  %v806 = vld [vmem:[%s3 + $0x1f8] sm:$0xff]
  %v807 = vld [vmem:[%s4] sm:$0x1]
  %v809 = vperm.slane %v807, 0
  %811 = vmatpush.msra.mxu0 %v758
  %812 = vmatpush.msra.mxu0 %v757
  %813 = vmatpush.msra.mxu0 %v756
  %814 = vmatpush.msra.mxu0 %v755
  %815 = vmatpush.msra.mxu0 %v754
  %816 = vmatpush.msra.mxu0 %v753
  %817 = vmatpush.msra.mxu0 %v752
  %818 = vmatpush.msra.mxu0 %v751
  %819 = vmatpush.msra.mxu0 %v750
  %820 = vmatpush.msra.mxu0 %v749
  %821 = vmatpush.msra.mxu0 %v748
  %822 = vmatpush.msra.mxu0 %v747
  %823 = vmatpush.msra.mxu0 %v746
  %824 = vmatpush.msra.mxu0 %v745
  %825 = vmatpush.msra.mxu0 %v744
  %826 = vmatpush.msra.mxu0 %v743
  %827 = vmatmul.f32.gmra.mxu0 %v739
  %v828 = vpop.f32.mrf.mxu0
  %v829 = vadd.f32 %v809, %v828
  %830 = vdwg.mxu0
  %831 = vmatpush.msra.mxu0 %v774
  %832 = vmatpush.msra.mxu0 %v773
  %833 = vmatpush.msra.mxu0 %v772
  %834 = vmatpush.msra.mxu0 %v771
  %835 = vmatpush.msra.mxu0 %v770
  %836 = vmatpush.msra.mxu0 %v769
  %837 = vmatpush.msra.mxu0 %v768
  %838 = vmatpush.msra.mxu0 %v767
  %839 = vmatpush.msra.mxu0 %v766
  %840 = vmatpush.msra.mxu0 %v765
  %841 = vmatpush.msra.mxu0 %v764
  %842 = vmatpush.msra.mxu0 %v763
  %843 = vmatpush.msra.mxu0 %v762
  %844 = vmatpush.msra.mxu0 %v761
  %845 = vmatpush.msra.mxu0 %v760
  %846 = vmatpush.msra.mxu0 %v759
  %847 = vmatmul.f32.gmra.mxu0 %v740
  %v848 = vpop.f32.mrf.mxu0
  %v849 = vadd.f32 %v829, %v848
  %850 = vdwg.mxu0
  %851 = vmatpush.msra.mxu0 %v790
  %852 = vmatpush.msra.mxu0 %v789
  %853 = vmatpush.msra.mxu0 %v788
  %854 = vmatpush.msra.mxu0 %v787
  %855 = vmatpush.msra.mxu0 %v786
  %856 = vmatpush.msra.mxu0 %v785
  %857 = vmatpush.msra.mxu0 %v784
  %858 = vmatpush.msra.mxu0 %v783
  %859 = vmatpush.msra.mxu0 %v782
  %860 = vmatpush.msra.mxu0 %v781
  %861 = vmatpush.msra.mxu0 %v780
  %862 = vmatpush.msra.mxu0 %v779
  %863 = vmatpush.msra.mxu0 %v778
  %864 = vmatpush.msra.mxu0 %v777
  %865 = vmatpush.msra.mxu0 %v776
  %866 = vmatpush.msra.mxu0 %v775
  %867 = vmatmul.f32.gmra.mxu0 %v741
  %v868 = vpop.f32.mrf.mxu0
  %v869 = vadd.f32 %v849, %v868
  %870 = vdwg.mxu0
  %871 = vmatpush.msra.mxu0 %v806
  %872 = vmatpush.msra.mxu0 %v805
  %873 = vmatpush.msra.mxu0 %v804
  %874 = vmatpush.msra.mxu0 %v803
  %875 = vmatpush.msra.mxu0 %v802
  %876 = vmatpush.msra.mxu0 %v801
  %877 = vmatpush.msra.mxu0 %v800
  %878 = vmatpush.msra.mxu0 %v799
  %879 = vmatpush.msra.mxu0 %v798
  %880 = vmatpush.msra.mxu0 %v797
  %881 = vmatpush.msra.mxu0 %v796
  %882 = vmatpush.msra.mxu0 %v795
  %883 = vmatpush.msra.mxu0 %v794
  %884 = vmatpush.msra.mxu0 %v793
  %885 = vmatpush.msra.mxu0 %v792
  %886 = vmatpush.msra.mxu0 %v791
  %887 = vmatmul.f32.gmra.mxu0 %v742
  %v888 = vpop.f32.mrf.mxu0
  %v889 = vadd.f32 %v869, %v888
  %890 = vdwg.mxu0
  %v891 = vld [vmem:[%s5] sm:$0xff]
  %v892 = vld [vmem:[%s5 + $0x8] sm:$0xff]
  %v893 = vld [vmem:[%s5 + $0x10] sm:$0xff]
  %v894 = vld [vmem:[%s5 + $0x18] sm:$0xff]
  %v895 = vld [vmem:[%s5 + $0x20] sm:$0xff]
  %v896 = vld [vmem:[%s5 + $0x28] sm:$0xff]
  %v897 = vld [vmem:[%s5 + $0x30] sm:$0xff]
  %v898 = vld [vmem:[%s5 + $0x38] sm:$0xff]
  %v899 = vld [vmem:[%s5 + $0x40] sm:$0xff]
  %v900 = vld [vmem:[%s5 + $0x48] sm:$0xff]
  %v901 = vld [vmem:[%s5 + $0x50] sm:$0xff]
  %v902 = vld [vmem:[%s5 + $0x58] sm:$0xff]
  %v903 = vld [vmem:[%s5 + $0x60] sm:$0xff]
  %v904 = vld [vmem:[%s5 + $0x68] sm:$0xff]
  %v905 = vld [vmem:[%s5 + $0x70] sm:$0xff]
  %v906 = vld [vmem:[%s5 + $0x78] sm:$0xff]
  %v907 = vld [vmem:[%s5 + $0x80] sm:$0xff]
  %v908 = vld [vmem:[%s5 + $0x88] sm:$0xff]
  %v909 = vld [vmem:[%s5 + $0x90] sm:$0xff]
  %v910 = vld [vmem:[%s5 + $0x98] sm:$0xff]
  %v911 = vld [vmem:[%s5 + $0xa0] sm:$0xff]
  %v912 = vld [vmem:[%s5 + $0xa8] sm:$0xff]
  %v913 = vld [vmem:[%s5 + $0xb0] sm:$0xff]
  %v914 = vld [vmem:[%s5 + $0xb8] sm:$0xff]
  %v915 = vld [vmem:[%s5 + $0xc0] sm:$0xff]
  %v916 = vld [vmem:[%s5 + $0xc8] sm:$0xff]
  %v917 = vld [vmem:[%s5 + $0xd0] sm:$0xff]
  %v918 = vld [vmem:[%s5 + $0xd8] sm:$0xff]
  %v919 = vld [vmem:[%s5 + $0xe0] sm:$0xff]
  %v920 = vld [vmem:[%s5 + $0xe8] sm:$0xff]
  %v921 = vld [vmem:[%s5 + $0xf0] sm:$0xff]
  %v922 = vld [vmem:[%s5 + $0xf8] sm:$0xff]
  %v923 = vld [vmem:[%s5 + $0x100] sm:$0xff]
  %v924 = vld [vmem:[%s5 + $0x108] sm:$0xff]
  %v925 = vld [vmem:[%s5 + $0x110] sm:$0xff]
  %v926 = vld [vmem:[%s5 + $0x118] sm:$0xff]
  %v927 = vld [vmem:[%s5 + $0x120] sm:$0xff]
  %v928 = vld [vmem:[%s5 + $0x128] sm:$0xff]
  %v929 = vld [vmem:[%s5 + $0x130] sm:$0xff]
  %v930 = vld [vmem:[%s5 + $0x138] sm:$0xff]
  %v931 = vld [vmem:[%s5 + $0x140] sm:$0xff]
  %v932 = vld [vmem:[%s5 + $0x148] sm:$0xff]
  %v933 = vld [vmem:[%s5 + $0x150] sm:$0xff]
  %v934 = vld [vmem:[%s5 + $0x158] sm:$0xff]
  %v935 = vld [vmem:[%s5 + $0x160] sm:$0xff]
  %v936 = vld [vmem:[%s5 + $0x168] sm:$0xff]
  %v937 = vld [vmem:[%s5 + $0x170] sm:$0xff]
  %v938 = vld [vmem:[%s5 + $0x178] sm:$0xff]
  %v939 = vld [vmem:[%s5 + $0x180] sm:$0xff]
  %v940 = vld [vmem:[%s5 + $0x188] sm:$0xff]
  %v941 = vld [vmem:[%s5 + $0x190] sm:$0xff]
  %v942 = vld [vmem:[%s5 + $0x198] sm:$0xff]
  %v943 = vld [vmem:[%s5 + $0x1a0] sm:$0xff]
  %v944 = vld [vmem:[%s5 + $0x1a8] sm:$0xff]
  %v945 = vld [vmem:[%s5 + $0x1b0] sm:$0xff]
  %v946 = vld [vmem:[%s5 + $0x1b8] sm:$0xff]
  %v947 = vld [vmem:[%s5 + $0x1c0] sm:$0xff]
  %v948 = vld [vmem:[%s5 + $0x1c8] sm:$0xff]
  %v949 = vld [vmem:[%s5 + $0x1d0] sm:$0xff]
  %v950 = vld [vmem:[%s5 + $0x1d8] sm:$0xff]
  %v951 = vld [vmem:[%s5 + $0x1e0] sm:$0xff]
  %v952 = vld [vmem:[%s5 + $0x1e8] sm:$0xff]
  %v953 = vld [vmem:[%s5 + $0x1f0] sm:$0xff]
  %v954 = vld [vmem:[%s5 + $0x1f8] sm:$0xff]
  %v955 = vld [vmem:[%s6] sm:$0x1]
  %v957 = vperm.slane %v955, 0
  %959 = vmatpush.msra.mxu0 %v906
  %960 = vmatpush.msra.mxu0 %v905
  %961 = vmatpush.msra.mxu0 %v904
  %962 = vmatpush.msra.mxu0 %v903
  %963 = vmatpush.msra.mxu0 %v902
  %964 = vmatpush.msra.mxu0 %v901
  %965 = vmatpush.msra.mxu0 %v900
  %966 = vmatpush.msra.mxu0 %v899
  %967 = vmatpush.msra.mxu0 %v898
  %968 = vmatpush.msra.mxu0 %v897
  %969 = vmatpush.msra.mxu0 %v896
  %970 = vmatpush.msra.mxu0 %v895
  %971 = vmatpush.msra.mxu0 %v894
  %972 = vmatpush.msra.mxu0 %v893
  %973 = vmatpush.msra.mxu0 %v892
  %974 = vmatpush.msra.mxu0 %v891
  %975 = vmatmul.f32.gmra.mxu0 %v739
  %v976 = vpop.f32.mrf.mxu0
  %v977 = vadd.f32 %v957, %v976
  %978 = vdwg.mxu0
  %979 = vmatpush.msra.mxu0 %v922
  %980 = vmatpush.msra.mxu0 %v921
  %981 = vmatpush.msra.mxu0 %v920
  %982 = vmatpush.msra.mxu0 %v919
  %983 = vmatpush.msra.mxu0 %v918
  %984 = vmatpush.msra.mxu0 %v917
  %985 = vmatpush.msra.mxu0 %v916
  %986 = vmatpush.msra.mxu0 %v915
  %987 = vmatpush.msra.mxu0 %v914
  %988 = vmatpush.msra.mxu0 %v913
  %989 = vmatpush.msra.mxu0 %v912
  %990 = vmatpush.msra.mxu0 %v911
  %991 = vmatpush.msra.mxu0 %v910
  %992 = vmatpush.msra.mxu0 %v909
  %993 = vmatpush.msra.mxu0 %v908
  %994 = vmatpush.msra.mxu0 %v907
  %995 = vmatmul.f32.gmra.mxu0 %v740
  %v996 = vpop.f32.mrf.mxu0
  %v997 = vadd.f32 %v977, %v996
  %998 = vdwg.mxu0
  %999 = vmatpush.msra.mxu0 %v938
  %1000 = vmatpush.msra.mxu0 %v937
  %1001 = vmatpush.msra.mxu0 %v936
  %1002 = vmatpush.msra.mxu0 %v935
  %1003 = vmatpush.msra.mxu0 %v934
  %1004 = vmatpush.msra.mxu0 %v933
  %1005 = vmatpush.msra.mxu0 %v932
  %1006 = vmatpush.msra.mxu0 %v931
  %1007 = vmatpush.msra.mxu0 %v930
  %1008 = vmatpush.msra.mxu0 %v929
  %1009 = vmatpush.msra.mxu0 %v928
  %1010 = vmatpush.msra.mxu0 %v927
  %1011 = vmatpush.msra.mxu0 %v926
  %1012 = vmatpush.msra.mxu0 %v925
  %1013 = vmatpush.msra.mxu0 %v924
  %1014 = vmatpush.msra.mxu0 %v923
  %1015 = vmatmul.f32.gmra.mxu0 %v741
  %v1016 = vpop.f32.mrf.mxu0
  %v1017 = vadd.f32 %v997, %v1016
  %1018 = vdwg.mxu0
  %1019 = vmatpush.msra.mxu0 %v954
  %1020 = vmatpush.msra.mxu0 %v953
  %1021 = vmatpush.msra.mxu0 %v952
  %1022 = vmatpush.msra.mxu0 %v951
  %1023 = vmatpush.msra.mxu0 %v950
  %1024 = vmatpush.msra.mxu0 %v949
  %1025 = vmatpush.msra.mxu0 %v948
  %1026 = vmatpush.msra.mxu0 %v947
  %1027 = vmatpush.msra.mxu0 %v946
  %1028 = vmatpush.msra.mxu0 %v945
  %1029 = vmatpush.msra.mxu0 %v944
  %1030 = vmatpush.msra.mxu0 %v943
  %1031 = vmatpush.msra.mxu0 %v942
  %1032 = vmatpush.msra.mxu0 %v941
  %1033 = vmatpush.msra.mxu0 %v940
  %1034 = vmatpush.msra.mxu0 %v939
  %1035 = vmatmul.f32.gmra.mxu0 %v742
  %v1036 = vpop.f32.mrf.mxu0
  %v1037 = vadd.f32 %v1017, %v1036
  %1038 = vdwg.mxu0
  %vm1039 = vcmp.gt.f32.partialorder %v889, 0.0
  %v1040 = vmin.f32 %v889, 0.0
  %v1041 = vmul.f32 %v1040, 1.442695
  %v1042 = vpow.pop %v1041
  %v1043 = vsub.f32 %v1042, 1.0
  %v1044 = vsel %vm1039, %v889, %v1043
  %v1045 = vadd.f32 %v1044, 1.0
  %v1046 = vld [vmem:[%s7] sm:$0xff]
  %v1047 = vld [vmem:[%s7 + $0x8] sm:$0xff]
  %v1048 = vld [vmem:[%s7 + $0x10] sm:$0xff]
  %v1049 = vld [vmem:[%s7 + $0x18] sm:$0xff]
  %v1050 = vld [vmem:[%s7 + $0x20] sm:$0xff]
  %v1051 = vld [vmem:[%s7 + $0x28] sm:$0xff]
  %v1052 = vld [vmem:[%s8] sm:$0x3f]
  %vm1053 = vcmask 48128
  %v1055 = vsel %vm1053, %v1037, 0
  %vm1057 = vcmask 1045504
  %v1059 = vsel %vm1057, %v1052, 0
  %1061 = vmatpush.msra.mxu0 0.0
  %1062 = vmatpush.msra.mxu0 0.0
  %1063 = vmatpush.msra.mxu0 0.0
  %1064 = vmatpush.msra.mxu0 0.0
  %1065 = vmatpush.msra.mxu0 0.0
  %1066 = vmatpush.msra.mxu0 0.0
  %1067 = vmatpush.msra.mxu0 0.0
  %1068 = vmatpush.msra.mxu0 0.0
  %1069 = vmatpush.msra.mxu0 0.0
  %1070 = vmatpush.msra.mxu0 0.0
  %1071 = vmatpush.msra.mxu0 0.0
  %1072 = vmatpush.msra.mxu0 0.0
  %1073 = vmatpush.msra.mxu0 0.0
  %1074 = vmatpush.msra.mxu0 0.0
  %1075 = vmatpush.msra.mxu0 0.0
  %1076 = vmatpush.msra.mxu0 %v1059
  %1077 = vmatmul.f32.gmra.mxu0 %v1055
  %v1078 = vpop.f32.mrf.mxu0
  %v1079 = vadd.f32 0.0, %v1078
  %1080 = vdwg.mxu0
  %vm1081 = vcmask 392192
  %v1083 = vsel %vm1081, %v1045, 0
  %1085 = vmatpush.msra.mxu0 0.0
  %1086 = vmatpush.msra.mxu0 0.0
  %1087 = vmatpush.msra.mxu0 0.0
  %1088 = vmatpush.msra.mxu0 0.0
  %1089 = vmatpush.msra.mxu0 0.0
  %1090 = vmatpush.msra.mxu0 0.0
  %1091 = vmatpush.msra.mxu0 0.0
  %1092 = vmatpush.msra.mxu0 0.0
  %1093 = vmatpush.msra.mxu0 0.0
  %1094 = vmatpush.msra.mxu0 0.0
  %1095 = vmatpush.msra.mxu0 %v1051
  %1096 = vmatpush.msra.mxu0 %v1050
  %1097 = vmatpush.msra.mxu0 %v1049
  %1098 = vmatpush.msra.mxu0 %v1048
  %1099 = vmatpush.msra.mxu0 %v1047
  %1100 = vmatpush.msra.mxu0 %v1046
  %1101 = vmatmul.f32.gmra.mxu0 %v1083
  %v1102 = vpop.f32.mrf.mxu0
  %v1103 = vadd.f32 %v1079, %v1102
  %1104 = vdwg.mxu0
  %1105 = vst [vmem:[%s9] sm:$0xff] %v1103
  // Predicated region
  $region38: #{denet_forward.7} parent=0 // pred_check
    _
  $region39: #{denet_forward.7} parent=0 // pred_check_branch
    %1107 = sbr.rel (0) target = $region41
  $region40: #{denet_forward.7} parent=0 // pred_region
    _
  $region41: #{denet_forward.7} parent=0 // pred_fallthru
    _
  // Predicated region
  $region42: #{denet_forward.7} parent=0 // pred_check
    _
  $region43: #{denet_forward.7} parent=0 // pred_check_branch
    %1109 = sbr.rel (0) target = $region45
  $region44: #{denet_forward.7} parent=0 // pred_region
    _
  $region45: #{denet_forward.7} parent=0 // pred_fallthru
    _

</llo_original>
